<compile_context>
chip_gen: v7x
topology: tpu7x:2x2x1
jax: 0.10.0
libtpu: 0.0.40
codegen_flags: <defaults>
</compile_context>

<pallas_src>
import functools
import math

import jax
import jax.numpy as jnp
from jax import lax
from jax.experimental import pallas as pl
from jax.experimental.pallas import tpu as pltpu


def _layernorm(x, gamma, beta, eps=1e-5):
    mu = jnp.mean(x, axis=-1, keepdims=True)
    var = jnp.mean((x - mu) ** 2, axis=-1, keepdims=True)
    return (x - mu) * lax.rsqrt(var + eps) * gamma + beta


def _cross_attn_kernel(
    # per-batch blocked inputs
    q_feat_ref, k_feat_ref,
    # grid-invariant params (full arrays, resident in VMEM, single-buffered)
    gq_ref, bq_ln_ref, gk_ref, bk_ln_ref,
    wq_ref, bq_ref, wkv_ref, bkv_ref, wo_ref, bo_ref,
    # outputs
    out_ref, attn_ref,
    # scratch
    q_s, k_s, v_s, acc_ref,
    *, num_heads, head_dim,
):
    h = pl.program_id(1)                       # head index (reduction axis)
    E = num_heads * head_dim
    scale = head_dim ** (-0.5)

    # ---- once per batch: LayerNorm + fused projections (big MXU matmuls) ----
    @pl.when(h == 0)
    def _project():
        qf = q_feat_ref[0].astype(jnp.float32)          # (Sq, Dq)
        kf = k_feat_ref[0].astype(jnp.float32)          # (Sk, Dk)
        qn = _layernorm(qf, gq_ref[...], bq_ln_ref[...])
        kn = _layernorm(kf, gk_ref[...], bk_ln_ref[...])

        # bf16 matmul inputs / f32 accumulation (intentional: MXU-native).
        q = jnp.dot(qn.astype(jnp.bfloat16), wq_ref[...],
                    preferred_element_type=jnp.float32) + bq_ref[...]
        q = q * scale                                    # fold 1/sqrt(hd) into q
        kv = jnp.dot(kn.astype(jnp.bfloat16), wkv_ref[...],
                     preferred_element_type=jnp.float32) + bkv_ref[...]

        q16 = q.astype(jnp.bfloat16)
        kv16 = kv.astype(jnp.bfloat16)
        # Split per head into leading-dim scratch slabs.  Static lane slices;
        # zero-cost when head_dim / E are multiples of 128 (production sizes).
        for hh in range(num_heads):
            lo = hh * head_dim
            q_s[hh] = q16[:, lo:lo + head_dim]
            k_s[hh] = kv16[:, lo:lo + head_dim]
            v_s[hh] = kv16[:, E + lo:E + lo + head_dim]

        # Initialise output-projection accumulator with the output bias.
        acc_ref[...] = jnp.broadcast_to(bo_ref[...], acc_ref.shape).astype(jnp.float32)

    # ---- per head: attention + per-head output-projection accumulation ----
    qh = q_s[h]                                          # (Sq, hd) bf16
    kh = k_s[h]                                          # (Sk, hd) bf16
    vh = v_s[h]                                          # (Sk, hd) bf16

    # scores = q @ k^T without materialising a transpose (contract on head_dim)
    s = lax.dot_general(qh, kh, (((1,), (1,)), ((), ())),
                        preferred_element_type=jnp.float32)   # (Sq, Sk) f32
    s = s - jnp.max(s, axis=-1, keepdims=True)
    e = jnp.exp(s)
    # Exact normalisation: returned attention rows sum to 1 (torch parity).
    p = e / jnp.sum(e, axis=-1, keepdims=True)

    # Direct indexed store of this head's probabilities — no stack/concat.
    attn_ref[0, 0] = p.astype(attn_ref.dtype)

    ctx = jnp.dot(p.astype(jnp.bfloat16), vh,
                  preferred_element_type=jnp.float32)         # (Sq, hd)
    # out += ctx_h @ W_o[h]   (per-head slice pre-reshaped wrapper-side)
    acc_ref[...] += jnp.dot(ctx.astype(jnp.bfloat16), wo_ref[h],
                            preferred_element_type=jnp.float32)

    @pl.when(h == num_heads - 1)
    def _finalize():
        out_ref[0] = acc_ref[...].astype(out_ref.dtype)


def prepare_params(params, num_heads):
    """One-time fusion/cast of weights (hoisted out of the per-call path)."""
    E = params['wq'].shape[1]
    head_dim = E // num_heads
    return dict(
        gq=params['gq'], bq_ln=params['bq_ln'],
        gk=params['gk'], bk_ln=params['bk_ln'],
        wq=params['wq'].astype(jnp.bfloat16),
        bq=params['bq'],
        wkv=jnp.concatenate([params['wk'], params['wv']], axis=1).astype(jnp.bfloat16),
        bkv=jnp.concatenate([params['bk'], params['bv']], axis=1),
        # W_o split per head: out = sum_h ctx_h @ W_o[h*hd:(h+1)*hd, :]
        wo_heads=params['wo'].reshape(num_heads, head_dim, E).astype(jnp.bfloat16),
        bo=params['bo'],
    )


def _tile_padded_bytes(shape, dtype):
    """Approximate VMEM footprint of an array, padded to (sublane, 128) tiles."""
    itemsize = jnp.dtype(dtype).itemsize
    dims = list(shape)
    dims[-1] = -(-dims[-1] // 128) * 128
    if len(dims) >= 2:
        sub = 8 * max(1, 4 // itemsize)          # 8 for f32, 16 for bf16
        dims[-2] = -(-dims[-2] // sub) * sub
    return math.prod(dims) * itemsize


def cross_modal_attention(query_features, key_features, prepared, *, num_heads):
    """query_features: [B, Sq, Dq]; key_features: [B, Sk, Dk]; prepared = prepare_params(...)."""
    B, Sq, Dq = query_features.shape
    Bk, Sk, Dk = key_features.shape
    assert Bk == B
    E = prepared['wq'].shape[1]
    assert E % num_heads == 0
    head_dim = E // num_heads

    kernel = functools.partial(_cross_attn_kernel,
                               num_heads=num_heads, head_dim=head_dim)

    # Grid-invariant params: whole array resident in VMEM, single-buffered
    # (no per-step DMA, no double-buffer — the review's weight-VMEM concern).
    weight_spec = pl.BlockSpec(memory_space=pltpu.MemorySpace.VMEM)

    in_specs = [
        pl.BlockSpec((1, Sq, Dq), lambda b, h: (b, 0, 0)),
        pl.BlockSpec((1, Sk, Dk), lambda b, h: (b, 0, 0)),
    ] + [weight_spec] * 10

    out_specs = [
        pl.BlockSpec((1, Sq, E), lambda b, h: (b, 0, 0)),         # revisited over h
        pl.BlockSpec((1, 1, Sq, Sk), lambda b, h: (b, h, 0, 0)),  # per-head block
    ]
    out_shape = [
        jax.ShapeDtypeStruct((B, Sq, E), jnp.float32),
        jax.ShapeDtypeStruct((B, num_heads, Sq, Sk), jnp.float32),
    ]
    scratch_shapes = [
        pltpu.VMEM((num_heads, Sq, head_dim), jnp.bfloat16),   # q (scaled)
        pltpu.VMEM((num_heads, Sk, head_dim), jnp.bfloat16),   # k
        pltpu.VMEM((num_heads, Sk, head_dim), jnp.bfloat16),   # v
        pltpu.VMEM((Sq, E), jnp.float32),                      # output accumulator
    ]

    weight_args = (
        prepared['gq'], prepared['bq_ln'], prepared['gk'], prepared['bk_ln'],
        prepared['wq'], prepared['bq'], prepared['wkv'], prepared['bkv'],
        prepared['wo_heads'], prepared['bo'],
    )

    # --- VMEM budget derived from the actual block sizes -------------------
    vmem_bytes = 0
    for shp, dt in [((1, Sq, Dq), query_features.dtype),      # pipelined blocks
                    ((1, Sk, Dk), key_features.dtype),        # (double-buffered)
                    ((1, Sq, E), jnp.float32),
                    ((1, 1, Sq, Sk), jnp.float32)]:
        vmem_bytes += 2 * _tile_padded_bytes(shp, dt)
    for a in weight_args:                                      # single-buffered
        vmem_bytes += _tile_padded_bytes(a.shape, a.dtype)
    for shp, dt in [((num_heads, Sq, head_dim), jnp.bfloat16),  # scratch
                    ((num_heads, Sk, head_dim), jnp.bfloat16),
                    ((num_heads, Sk, head_dim), jnp.bfloat16),
                    ((Sq, E), jnp.float32)]:
        vmem_bytes += _tile_padded_bytes(shp, dt)
    vmem_limit = min(max(int(vmem_bytes * 1.5) + (4 << 20), 16 << 20), 128 << 20)

    # Advisory cost hint for XLA scheduling.
    flops = 2 * B * (Sq * Dq * E + Sk * Dk * 2 * E
                     + num_heads * Sq * Sk * head_dim * 2 + Sq * E * E)
    transcendentals = B * num_heads * Sq * Sk
    bytes_accessed = (query_features.size * 4 + key_features.size * 4
                      + sum(int(a.size) * jnp.dtype(a.dtype).itemsize
                            for a in weight_args)
                      + (B * Sq * E + B * num_heads * Sq * Sk) * 4)

    return pl.pallas_call(
        kernel,
        grid=(B, num_heads),
        in_specs=in_specs,
        out_specs=out_specs,
        out_shape=out_shape,
        scratch_shapes=scratch_shapes,
        cost_estimate=pl.CostEstimate(
            flops=flops, transcendentals=transcendentals,
            bytes_accessed=bytes_accessed),
        compiler_params=pltpu.CompilerParams(
            dimension_semantics=("parallel", "arbitrary"),
            vmem_limit_bytes=vmem_limit),
    )(query_features, key_features, *weight_args)


def init_params(key, query_dim, key_dim, embed_dim):
    ks = jax.random.split(key, 8)

    def lin(k, din, dout):
        # torch nn.Linear-style uniform init, stored as (in, out)
        bound = 1.0 / (din ** 0.5)
        w = jax.random.uniform(k, (din, dout), jnp.float32, -bound, bound)
        b = jax.random.uniform(jax.random.fold_in(k, 1), (1, dout),
                               jnp.float32, -bound, bound)
        return w, b

    wq, bq = lin(ks[0], query_dim, embed_dim)
    wk, bk = lin(ks[1], key_dim, embed_dim)
    wv, bv = lin(ks[2], key_dim, embed_dim)
    wo, bo = lin(ks[3], embed_dim, embed_dim)
    return dict(
        wq=wq, bq=bq, wk=wk, bk=bk, wv=wv, bv=bv, wo=wo, bo=bo,
        gq=jnp.ones((1, query_dim), jnp.float32),
        bq_ln=jnp.zeros((1, query_dim), jnp.float32),
        gk=jnp.ones((1, key_dim), jnp.float32),
        bk_ln=jnp.zeros((1, key_dim), jnp.float32),
    )


def reference(query_features, key_features, params, *, num_heads):
    """Pure-JAX f32 reference mirroring the PyTorch forward (eval mode)."""
    B, Sq, _ = query_features.shape
    _, Sk, _ = key_features.shape
    E = params['wq'].shape[1]
    hd = E // num_heads
    qn = _layernorm(query_features, params['gq'][0], params['bq_ln'][0])
    kn = _layernorm(key_features, params['gk'][0], params['bk_ln'][0])
    q = qn @ params['wq'] + params['bq'][0]
    k = kn @ params['wk'] + params['bk'][0]
    v = kn @ params['wv'] + params['bv'][0]
    q = q.reshape(B, Sq, num_heads, hd).transpose(0, 2, 1, 3)
    k = k.reshape(B, Sk, num_heads, hd).transpose(0, 2, 1, 3)
    v = v.reshape(B, Sk, num_heads, hd).transpose(0, 2, 1, 3)
    scores = jnp.einsum('bhqd,bhkd->bhqk', q, k) * (hd ** -0.5)
    attn = jax.nn.softmax(scores, axis=-1)
    ctx = jnp.einsum('bhqk,bhkd->bhqd', attn, v)
    ctx = ctx.transpose(0, 2, 1, 3).reshape(B, Sq, E)
    out = ctx @ params['wo'] + params['bo'][0]
    return out, attn


if __name__ == "__main__":
    # Small shapes consistent with the module's forward:
    # query_features [B, Sq, query_dim], key_features [B, Sk, key_dim]
    B, Sq, Sk = 2, 8, 16
    query_dim, key_dim, embed_dim, num_heads = 32, 48, 32, 4

    root = jax.random.PRNGKey(0)
    k_q, k_k, k_p = jax.random.split(root, 3)
    query_features = jax.random.normal(k_q, (B, Sq, query_dim), jnp.float32)
    key_features = jax.random.normal(k_k, (B, Sk, key_dim), jnp.float32)
    params = init_params(k_p, query_dim, key_dim, embed_dim)
    prepared = prepare_params(params, num_heads)   # one-time weight fusion/cast

    out, attn = cross_modal_attention(
        query_features, key_features, prepared, num_heads=num_heads)
    jax.block_until_ready((out, attn))

    out_ref, attn_ref = reference(
        query_features, key_features, params, num_heads=num_heads)
    assert out.shape == (B, Sq, embed_dim)
    assert attn.shape == (B, num_heads, Sq, Sk)
    # bf16 matmul inputs (f32 accumulate) => looser tolerance vs f32 reference.
    assert jnp.allclose(out, out_ref, atol=5e-2, rtol=5e-2), \
        float(jnp.max(jnp.abs(out - out_ref)))
    assert jnp.allclose(attn, attn_ref, atol=5e-2, rtol=5e-2), \
        float(jnp.max(jnp.abs(attn - attn_ref)))

    print("KERNEL_OK")
</pallas_src>

<mosaic_0001>
module attributes {stable_mosaic.version = 11 : i64} {
  func.func @_cross_attn_kernel(%arg0: i32, %arg1: i32, %arg2: memref<1x8x32xf32, #tpu.memory_space<vmem>>, %arg3: memref<1x16x48xf32, #tpu.memory_space<vmem>>, %arg4: memref<1x32xf32, #tpu.memory_space<vmem>>, %arg5: memref<1x32xf32, #tpu.memory_space<vmem>>, %arg6: memref<1x48xf32, #tpu.memory_space<vmem>>, %arg7: memref<1x48xf32, #tpu.memory_space<vmem>>, %arg8: memref<32x32xbf16, #tpu.memory_space<vmem>>, %arg9: memref<1x32xf32, #tpu.memory_space<vmem>>, %arg10: memref<48x64xbf16, #tpu.memory_space<vmem>>, %arg11: memref<1x64xf32, #tpu.memory_space<vmem>>, %arg12: memref<4x8x32xbf16, #tpu.memory_space<vmem>>, %arg13: memref<1x32xf32, #tpu.memory_space<vmem>>, %arg14: memref<1x8x32xf32, #tpu.memory_space<vmem>>, %arg15: memref<1x1x8x16xf32, #tpu.memory_space<vmem>>, %arg16: memref<4x8x8xbf16, #tpu.memory_space<vmem>>, %arg17: memref<4x16x8xbf16, #tpu.memory_space<vmem>>, %arg18: memref<4x16x8xbf16, #tpu.memory_space<vmem>>, %arg19: memref<8x32xf32, #tpu.memory_space<vmem>>) attributes {dimension_semantics = [#tpu.dimension_semantics<parallel>, #tpu.dimension_semantics<arbitrary>], iteration_bounds = array<i64: 2, 4>, scalar_prefetch = 0 : i64, scratch_operands = 4 : i64, tpu.core_type = #tpu.core_type<tc>, window_params = [{transform_indices = @transform_0, window_bounds = array<i64: 1, 8, 32>}, {transform_indices = @transform_1, window_bounds = array<i64: 1, 16, 48>}, {pipeline_mode = #tpu.pipeline_mode<synchronous>, transform_indices = @transform_2, window_bounds = array<i64: 1, 32>}, {pipeline_mode = #tpu.pipeline_mode<synchronous>, transform_indices = @transform_3, window_bounds = array<i64: 1, 32>}, {pipeline_mode = #tpu.pipeline_mode<synchronous>, transform_indices = @transform_4, window_bounds = array<i64: 1, 48>}, {pipeline_mode = #tpu.pipeline_mode<synchronous>, transform_indices = @transform_5, window_bounds = array<i64: 1, 48>}, {pipeline_mode = #tpu.pipeline_mode<synchronous>, transform_indices = @transform_6, window_bounds = array<i64: 32, 32>}, {pipeline_mode = #tpu.pipeline_mode<synchronous>, transform_indices = @transform_7, window_bounds = array<i64: 1, 32>}, {pipeline_mode = #tpu.pipeline_mode<synchronous>, transform_indices = @transform_8, window_bounds = array<i64: 48, 64>}, {pipeline_mode = #tpu.pipeline_mode<synchronous>, transform_indices = @transform_9, window_bounds = array<i64: 1, 64>}, {pipeline_mode = #tpu.pipeline_mode<synchronous>, transform_indices = @transform_10, window_bounds = array<i64: 4, 8, 32>}, {pipeline_mode = #tpu.pipeline_mode<synchronous>, transform_indices = @transform_11, window_bounds = array<i64: 1, 32>}, {transform_indices = @transform_12, window_bounds = array<i64: 1, 8, 32>}, {transform_indices = @transform_13, window_bounds = array<i64: 1, 1, 8, 16>}]} {
    %c0_i32 = arith.constant 0 : i32
    %0 = arith.cmpi eq, %arg1, %c0_i32 : i32
    %1 = arith.extui %0 : i1 to i32
    %c0_i32_0 = arith.constant 0 : i32
    %2 = arith.cmpi ne, %1, %c0_i32_0 : i32
    scf.if %2 {
      %c0_21 = arith.constant 0 : index
      %c0_22 = arith.constant 0 : index
      %c0_23 = arith.constant 0 : index
      %38 = vector.load %arg2[%c0_21, %c0_22, %c0_23] : memref<1x8x32xf32, #tpu.memory_space<vmem>>, vector<1x8x32xf32>
      %39 = vector.shape_cast %38 : vector<1x8x32xf32> to vector<8x32xf32>
      %c0_24 = arith.constant 0 : index
      %c0_25 = arith.constant 0 : index
      %c0_26 = arith.constant 0 : index
      %40 = vector.load %arg3[%c0_24, %c0_25, %c0_26] : memref<1x16x48xf32, #tpu.memory_space<vmem>>, vector<1x16x48xf32>
      %41 = vector.shape_cast %40 : vector<1x16x48xf32> to vector<16x48xf32>
      %c0_27 = arith.constant 0 : index
      %c0_28 = arith.constant 0 : index
      %42 = vector.load %arg4[%c0_27, %c0_28] : memref<1x32xf32, #tpu.memory_space<vmem>>, vector<1x32xf32>
      %c0_29 = arith.constant 0 : index
      %c0_30 = arith.constant 0 : index
      %43 = vector.load %arg5[%c0_29, %c0_30] : memref<1x32xf32, #tpu.memory_space<vmem>>, vector<1x32xf32>
      %cst_31 = arith.constant dense<0.000000e+00> : vector<8xf32>
      %44 = vector.multi_reduction <add>, %39, %cst_31 [1] : vector<8x32xf32> to vector<8xf32>
      %45 = vector.shape_cast %44 : vector<8xf32> to vector<8x1xf32>
      %cst_32 = arith.constant 3.200000e+01 : f32
      %46 = vector.broadcast %cst_32 : f32 to vector<8x1xf32>
      %47 = arith.divf %45, %46 : vector<8x1xf32>
      %48 = vector.broadcast %47 : vector<8x1xf32> to vector<8x32xf32>
      %49 = arith.subf %39, %48 : vector<8x32xf32>
      %50 = arith.mulf %49, %49 : vector<8x32xf32>
      %cst_33 = arith.constant dense<0.000000e+00> : vector<8xf32>
      %51 = vector.multi_reduction <add>, %50, %cst_33 [1] : vector<8x32xf32> to vector<8xf32>
      %52 = vector.shape_cast %51 : vector<8xf32> to vector<8x1xf32>
      %cst_34 = arith.constant 3.200000e+01 : f32
      %53 = vector.broadcast %cst_34 : f32 to vector<8x1xf32>
      %54 = arith.divf %52, %53 : vector<8x1xf32>
      %55 = vector.broadcast %47 : vector<8x1xf32> to vector<8x32xf32>
      %56 = arith.subf %39, %55 : vector<8x32xf32>
      %cst_35 = arith.constant 9.99999974E-6 : f32
      %57 = vector.broadcast %cst_35 : f32 to vector<8x1xf32>
      %58 = arith.addf %54, %57 : vector<8x1xf32>
      %59 = math.rsqrt %58 : vector<8x1xf32>
      %60 = vector.broadcast %59 : vector<8x1xf32> to vector<8x32xf32>
      %61 = arith.mulf %56, %60 : vector<8x32xf32>
      %62 = vector.broadcast %42 : vector<1x32xf32> to vector<8x32xf32>
      %63 = arith.mulf %61, %62 : vector<8x32xf32>
      %64 = vector.broadcast %43 : vector<1x32xf32> to vector<8x32xf32>
      %65 = arith.addf %63, %64 : vector<8x32xf32>
      %c0_36 = arith.constant 0 : index
      %c0_37 = arith.constant 0 : index
      %66 = vector.load %arg6[%c0_36, %c0_37] : memref<1x48xf32, #tpu.memory_space<vmem>>, vector<1x48xf32>
      %c0_38 = arith.constant 0 : index
      %c0_39 = arith.constant 0 : index
      %67 = vector.load %arg7[%c0_38, %c0_39] : memref<1x48xf32, #tpu.memory_space<vmem>>, vector<1x48xf32>
      %cst_40 = arith.constant dense<0.000000e+00> : vector<16xf32>
      %68 = vector.multi_reduction <add>, %41, %cst_40 [1] : vector<16x48xf32> to vector<16xf32>
      %69 = vector.shape_cast %68 : vector<16xf32> to vector<16x1xf32>
      %cst_41 = arith.constant 4.800000e+01 : f32
      %70 = vector.broadcast %cst_41 : f32 to vector<16x1xf32>
      %71 = arith.divf %69, %70 : vector<16x1xf32>
      %72 = vector.broadcast %71 : vector<16x1xf32> to vector<16x48xf32>
      %73 = arith.subf %41, %72 : vector<16x48xf32>
      %74 = arith.mulf %73, %73 : vector<16x48xf32>
      %cst_42 = arith.constant dense<0.000000e+00> : vector<16xf32>
      %75 = vector.multi_reduction <add>, %74, %cst_42 [1] : vector<16x48xf32> to vector<16xf32>
      %76 = vector.shape_cast %75 : vector<16xf32> to vector<16x1xf32>
      %cst_43 = arith.constant 4.800000e+01 : f32
      %77 = vector.broadcast %cst_43 : f32 to vector<16x1xf32>
      %78 = arith.divf %76, %77 : vector<16x1xf32>
      %79 = vector.broadcast %71 : vector<16x1xf32> to vector<16x48xf32>
      %80 = arith.subf %41, %79 : vector<16x48xf32>
      %cst_44 = arith.constant 9.99999974E-6 : f32
      %81 = vector.broadcast %cst_44 : f32 to vector<16x1xf32>
      %82 = arith.addf %78, %81 : vector<16x1xf32>
      %83 = math.rsqrt %82 : vector<16x1xf32>
      %84 = vector.broadcast %83 : vector<16x1xf32> to vector<16x48xf32>
      %85 = arith.mulf %80, %84 : vector<16x48xf32>
      %86 = vector.broadcast %66 : vector<1x48xf32> to vector<16x48xf32>
      %87 = arith.mulf %85, %86 : vector<16x48xf32>
      %88 = vector.broadcast %67 : vector<1x48xf32> to vector<16x48xf32>
      %89 = arith.addf %87, %88 : vector<16x48xf32>
      %90 = arith.truncf %65 : vector<8x32xf32> to vector<8x32xbf16>
      %c0_45 = arith.constant 0 : index
      %c0_46 = arith.constant 0 : index
      %91 = vector.load %arg8[%c0_45, %c0_46] : memref<32x32xbf16, #tpu.memory_space<vmem>>, vector<32x32xbf16>
      %cst_47 = arith.constant dense<0.000000e+00> : vector<8x32xf32>
      %92 = tpu.matmul %90, %91, %cst_47 {dimension_numbers = #tpu.dot_dimension_numbers<[1], [0], [0], [1], [0, 0, 1, 1], [], []>} : vector<8x32xbf16>, vector<32x32xbf16>, vector<8x32xf32> -> vector<8x32xf32>
      %c0_48 = arith.constant 0 : index
      %c0_49 = arith.constant 0 : index
      %93 = vector.load %arg9[%c0_48, %c0_49] : memref<1x32xf32, #tpu.memory_space<vmem>>, vector<1x32xf32>
      %94 = vector.broadcast %93 : vector<1x32xf32> to vector<8x32xf32>
      %95 = arith.addf %92, %94 : vector<8x32xf32>
      %cst_50 = arith.constant 0.353553385 : f32
      %96 = vector.broadcast %cst_50 : f32 to vector<8x32xf32>
      %97 = arith.mulf %95, %96 : vector<8x32xf32>
      %98 = arith.truncf %89 : vector<16x48xf32> to vector<16x48xbf16>
      %c0_51 = arith.constant 0 : index
      %c0_52 = arith.constant 0 : index
      %99 = vector.load %arg10[%c0_51, %c0_52] : memref<48x64xbf16, #tpu.memory_space<vmem>>, vector<48x64xbf16>
      %cst_53 = arith.constant dense<0.000000e+00> : vector<16x64xf32>
      %100 = tpu.matmul %98, %99, %cst_53 {dimension_numbers = #tpu.dot_dimension_numbers<[1], [0], [0], [1], [0, 0, 1, 1], [], []>} : vector<16x48xbf16>, vector<48x64xbf16>, vector<16x64xf32> -> vector<16x64xf32>
      %c0_54 = arith.constant 0 : index
      %c0_55 = arith.constant 0 : index
      %101 = vector.load %arg11[%c0_54, %c0_55] : memref<1x64xf32, #tpu.memory_space<vmem>>, vector<1x64xf32>
      %102 = vector.broadcast %101 : vector<1x64xf32> to vector<16x64xf32>
      %103 = arith.addf %100, %102 : vector<16x64xf32>
      %104 = arith.truncf %97 : vector<8x32xf32> to vector<8x32xbf16>
      %105 = arith.truncf %103 : vector<16x64xf32> to vector<16x64xbf16>
      %106 = vector.extract_strided_slice %104 {offsets = [0, 0], sizes = [8, 8], strides = [1, 1]} : vector<8x32xbf16> to vector<8x8xbf16>
      %c0_56 = arith.constant 0 : index
      %c0_57 = arith.constant 0 : index
      %c0_58 = arith.constant 0 : index
      %107 = vector.load %arg16[%c0_56, %c0_57, %c0_58] : memref<4x8x8xbf16, #tpu.memory_space<vmem>>, vector<1x8x8xbf16>
      %108 = vector.shape_cast %107 : vector<1x8x8xbf16> to vector<8x8xbf16>
      %109 = vector.shape_cast %106 : vector<8x8xbf16> to vector<1x8x8xbf16>
      tpu.vector_store %arg16[%c0_56, %c0_57, %c0_58], %109 {strides = array<i32>} : memref<4x8x8xbf16, #tpu.memory_space<vmem>>, vector<1x8x8xbf16>,
      %110 = vector.extract_strided_slice %105 {offsets = [0, 0], sizes = [16, 8], strides = [1, 1]} : vector<16x64xbf16> to vector<16x8xbf16>
      %c0_59 = arith.constant 0 : index
      %c0_60 = arith.constant 0 : index
      %c0_61 = arith.constant 0 : index
      %111 = vector.load %arg17[%c0_59, %c0_60, %c0_61] : memref<4x16x8xbf16, #tpu.memory_space<vmem>>, vector<1x16x8xbf16>
      %112 = vector.shape_cast %111 : vector<1x16x8xbf16> to vector<16x8xbf16>
      %113 = vector.shape_cast %110 : vector<16x8xbf16> to vector<1x16x8xbf16>
      tpu.vector_store %arg17[%c0_59, %c0_60, %c0_61], %113 {strides = array<i32>} : memref<4x16x8xbf16, #tpu.memory_space<vmem>>, vector<1x16x8xbf16>,
      %114 = vector.extract_strided_slice %105 {offsets = [0, 32], sizes = [16, 8], strides = [1, 1]} : vector<16x64xbf16> to vector<16x8xbf16>
      %c0_62 = arith.constant 0 : index
      %c0_63 = arith.constant 0 : index
      %c0_64 = arith.constant 0 : index
      %115 = vector.load %arg18[%c0_62, %c0_63, %c0_64] : memref<4x16x8xbf16, #tpu.memory_space<vmem>>, vector<1x16x8xbf16>
      %116 = vector.shape_cast %115 : vector<1x16x8xbf16> to vector<16x8xbf16>
      %117 = vector.shape_cast %114 : vector<16x8xbf16> to vector<1x16x8xbf16>
      tpu.vector_store %arg18[%c0_62, %c0_63, %c0_64], %117 {strides = array<i32>} : memref<4x16x8xbf16, #tpu.memory_space<vmem>>, vector<1x16x8xbf16>,
      %118 = vector.extract_strided_slice %104 {offsets = [0, 8], sizes = [8, 8], strides = [1, 1]} : vector<8x32xbf16> to vector<8x8xbf16>
      %c1 = arith.constant 1 : index
      %c0_65 = arith.constant 0 : index
      %c0_66 = arith.constant 0 : index
      %119 = vector.load %arg16[%c1, %c0_65, %c0_66] : memref<4x8x8xbf16, #tpu.memory_space<vmem>>, vector<1x8x8xbf16>
      %120 = vector.shape_cast %119 : vector<1x8x8xbf16> to vector<8x8xbf16>
      %121 = vector.shape_cast %118 : vector<8x8xbf16> to vector<1x8x8xbf16>
      tpu.vector_store %arg16[%c1, %c0_65, %c0_66], %121 {strides = array<i32>} : memref<4x8x8xbf16, #tpu.memory_space<vmem>>, vector<1x8x8xbf16>,
      %122 = vector.extract_strided_slice %105 {offsets = [0, 8], sizes = [16, 8], strides = [1, 1]} : vector<16x64xbf16> to vector<16x8xbf16>
      %c1_67 = arith.constant 1 : index
      %c0_68 = arith.constant 0 : index
      %c0_69 = arith.constant 0 : index
      %123 = vector.load %arg17[%c1_67, %c0_68, %c0_69] : memref<4x16x8xbf16, #tpu.memory_space<vmem>>, vector<1x16x8xbf16>
      %124 = vector.shape_cast %123 : vector<1x16x8xbf16> to vector<16x8xbf16>
      %125 = vector.shape_cast %122 : vector<16x8xbf16> to vector<1x16x8xbf16>
      tpu.vector_store %arg17[%c1_67, %c0_68, %c0_69], %125 {strides = array<i32>} : memref<4x16x8xbf16, #tpu.memory_space<vmem>>, vector<1x16x8xbf16>,
      %126 = vector.extract_strided_slice %105 {offsets = [0, 40], sizes = [16, 8], strides = [1, 1]} : vector<16x64xbf16> to vector<16x8xbf16>
      %c1_70 = arith.constant 1 : index
      %c0_71 = arith.constant 0 : index
      %c0_72 = arith.constant 0 : index
      %127 = vector.load %arg18[%c1_70, %c0_71, %c0_72] : memref<4x16x8xbf16, #tpu.memory_space<vmem>>, vector<1x16x8xbf16>
      %128 = vector.shape_cast %127 : vector<1x16x8xbf16> to vector<16x8xbf16>
      %129 = vector.shape_cast %126 : vector<16x8xbf16> to vector<1x16x8xbf16>
      tpu.vector_store %arg18[%c1_70, %c0_71, %c0_72], %129 {strides = array<i32>} : memref<4x16x8xbf16, #tpu.memory_space<vmem>>, vector<1x16x8xbf16>,
      %130 = vector.extract_strided_slice %104 {offsets = [0, 16], sizes = [8, 8], strides = [1, 1]} : vector<8x32xbf16> to vector<8x8xbf16>
      %c2 = arith.constant 2 : index
      %c0_73 = arith.constant 0 : index
      %c0_74 = arith.constant 0 : index
      %131 = vector.load %arg16[%c2, %c0_73, %c0_74] : memref<4x8x8xbf16, #tpu.memory_space<vmem>>, vector<1x8x8xbf16>
      %132 = vector.shape_cast %131 : vector<1x8x8xbf16> to vector<8x8xbf16>
      %133 = vector.shape_cast %130 : vector<8x8xbf16> to vector<1x8x8xbf16>
      tpu.vector_store %arg16[%c2, %c0_73, %c0_74], %133 {strides = array<i32>} : memref<4x8x8xbf16, #tpu.memory_space<vmem>>, vector<1x8x8xbf16>,
      %134 = vector.extract_strided_slice %105 {offsets = [0, 16], sizes = [16, 8], strides = [1, 1]} : vector<16x64xbf16> to vector<16x8xbf16>
      %c2_75 = arith.constant 2 : index
      %c0_76 = arith.constant 0 : index
      %c0_77 = arith.constant 0 : index
      %135 = vector.load %arg17[%c2_75, %c0_76, %c0_77] : memref<4x16x8xbf16, #tpu.memory_space<vmem>>, vector<1x16x8xbf16>
      %136 = vector.shape_cast %135 : vector<1x16x8xbf16> to vector<16x8xbf16>
      %137 = vector.shape_cast %134 : vector<16x8xbf16> to vector<1x16x8xbf16>
      tpu.vector_store %arg17[%c2_75, %c0_76, %c0_77], %137 {strides = array<i32>} : memref<4x16x8xbf16, #tpu.memory_space<vmem>>, vector<1x16x8xbf16>,
      %138 = vector.extract_strided_slice %105 {offsets = [0, 48], sizes = [16, 8], strides = [1, 1]} : vector<16x64xbf16> to vector<16x8xbf16>
      %c2_78 = arith.constant 2 : index
      %c0_79 = arith.constant 0 : index
      %c0_80 = arith.constant 0 : index
      %139 = vector.load %arg18[%c2_78, %c0_79, %c0_80] : memref<4x16x8xbf16, #tpu.memory_space<vmem>>, vector<1x16x8xbf16>
      %140 = vector.shape_cast %139 : vector<1x16x8xbf16> to vector<16x8xbf16>
      %141 = vector.shape_cast %138 : vector<16x8xbf16> to vector<1x16x8xbf16>
      tpu.vector_store %arg18[%c2_78, %c0_79, %c0_80], %141 {strides = array<i32>} : memref<4x16x8xbf16, #tpu.memory_space<vmem>>, vector<1x16x8xbf16>,
      %142 = vector.extract_strided_slice %104 {offsets = [0, 24], sizes = [8, 8], strides = [1, 1]} : vector<8x32xbf16> to vector<8x8xbf16>
      %c3 = arith.constant 3 : index
      %c0_81 = arith.constant 0 : index
      %c0_82 = arith.constant 0 : index
      %143 = vector.load %arg16[%c3, %c0_81, %c0_82] : memref<4x8x8xbf16, #tpu.memory_space<vmem>>, vector<1x8x8xbf16>
      %144 = vector.shape_cast %143 : vector<1x8x8xbf16> to vector<8x8xbf16>
      %145 = vector.shape_cast %142 : vector<8x8xbf16> to vector<1x8x8xbf16>
      tpu.vector_store %arg16[%c3, %c0_81, %c0_82], %145 {strides = array<i32>} : memref<4x8x8xbf16, #tpu.memory_space<vmem>>, vector<1x8x8xbf16>,
      %146 = vector.extract_strided_slice %105 {offsets = [0, 24], sizes = [16, 8], strides = [1, 1]} : vector<16x64xbf16> to vector<16x8xbf16>
      %c3_83 = arith.constant 3 : index
      %c0_84 = arith.constant 0 : index
      %c0_85 = arith.constant 0 : index
      %147 = vector.load %arg17[%c3_83, %c0_84, %c0_85] : memref<4x16x8xbf16, #tpu.memory_space<vmem>>, vector<1x16x8xbf16>
      %148 = vector.shape_cast %147 : vector<1x16x8xbf16> to vector<16x8xbf16>
      %149 = vector.shape_cast %146 : vector<16x8xbf16> to vector<1x16x8xbf16>
      tpu.vector_store %arg17[%c3_83, %c0_84, %c0_85], %149 {strides = array<i32>} : memref<4x16x8xbf16, #tpu.memory_space<vmem>>, vector<1x16x8xbf16>,
      %150 = vector.extract_strided_slice %105 {offsets = [0, 56], sizes = [16, 8], strides = [1, 1]} : vector<16x64xbf16> to vector<16x8xbf16>
      %c3_86 = arith.constant 3 : index
      %c0_87 = arith.constant 0 : index
      %c0_88 = arith.constant 0 : index
      %151 = vector.load %arg18[%c3_86, %c0_87, %c0_88] : memref<4x16x8xbf16, #tpu.memory_space<vmem>>, vector<1x16x8xbf16>
      %152 = vector.shape_cast %151 : vector<1x16x8xbf16> to vector<16x8xbf16>
      %153 = vector.shape_cast %150 : vector<16x8xbf16> to vector<1x16x8xbf16>
      tpu.vector_store %arg18[%c3_86, %c0_87, %c0_88], %153 {strides = array<i32>} : memref<4x16x8xbf16, #tpu.memory_space<vmem>>, vector<1x16x8xbf16>,
      %c0_89 = arith.constant 0 : index
      %c0_90 = arith.constant 0 : index
      %154 = vector.load %arg13[%c0_89, %c0_90] : memref<1x32xf32, #tpu.memory_space<vmem>>, vector<1x32xf32>
      %155 = vector.shape_cast %154 : vector<1x32xf32> to vector<1x32xf32>
      %156 = vector.broadcast %155 : vector<1x32xf32> to vector<8x32xf32>
      %c0_91 = arith.constant 0 : index
      %c0_92 = arith.constant 0 : index
      %157 = vector.load %arg19[%c0_91, %c0_92] : memref<8x32xf32, #tpu.memory_space<vmem>>, vector<8x32xf32>
      tpu.vector_store %arg19[%c0_91, %c0_92], %156 {strides = array<i32>} : memref<8x32xf32, #tpu.memory_space<vmem>>, vector<8x32xf32>,
    } else {
    }
    %3 = arith.index_cast %arg1 : i32 to index
    %c0 = arith.constant 0 : index
    %c0_1 = arith.constant 0 : index
    %4 = vector.load %arg16[%3, %c0, %c0_1] : memref<4x8x8xbf16, #tpu.memory_space<vmem>>, vector<1x8x8xbf16>
    %5 = vector.shape_cast %4 : vector<1x8x8xbf16> to vector<8x8xbf16>
    %6 = arith.index_cast %arg1 : i32 to index
    %c0_2 = arith.constant 0 : index
    %c0_3 = arith.constant 0 : index
    %7 = vector.load %arg17[%6, %c0_2, %c0_3] : memref<4x16x8xbf16, #tpu.memory_space<vmem>>, vector<1x16x8xbf16>
    %8 = vector.shape_cast %7 : vector<1x16x8xbf16> to vector<16x8xbf16>
    %9 = arith.index_cast %arg1 : i32 to index
    %c0_4 = arith.constant 0 : index
    %c0_5 = arith.constant 0 : index
    %10 = vector.load %arg18[%9, %c0_4, %c0_5] : memref<4x16x8xbf16, #tpu.memory_space<vmem>>, vector<1x16x8xbf16>
    %11 = vector.shape_cast %10 : vector<1x16x8xbf16> to vector<16x8xbf16>
    %cst = arith.constant dense<0.000000e+00> : vector<8x16xf32>
    %12 = tpu.matmul %5, %8, %cst {dimension_numbers = #tpu.dot_dimension_numbers<[1], [1], [0], [0], [0, 0, 1, 0], [], []>} : vector<8x8xbf16>, vector<16x8xbf16>, vector<8x16xf32> -> vector<8x16xf32>
    %cst_6 = arith.constant dense<0xFF800000> : vector<8xf32>
    %13 = vector.multi_reduction <maximumf>, %12, %cst_6 [1] : vector<8x16xf32> to vector<8xf32>
    %14 = vector.shape_cast %13 : vector<8xf32> to vector<8x1xf32>
    %15 = vector.broadcast %14 : vector<8x1xf32> to vector<8x16xf32>
    %16 = arith.subf %12, %15 : vector<8x16xf32>
    %17 = math.exp %16 : vector<8x16xf32>
    %cst_7 = arith.constant dense<0.000000e+00> : vector<8xf32>
    %18 = vector.multi_reduction <add>, %17, %cst_7 [1] : vector<8x16xf32> to vector<8xf32>
    %19 = vector.shape_cast %18 : vector<8xf32> to vector<8x1xf32>
    %20 = vector.broadcast %19 : vector<8x1xf32> to vector<8x16xf32>
    %21 = arith.divf %17, %20 : vector<8x16xf32>
    %c0_8 = arith.constant 0 : index
    %c0_9 = arith.constant 0 : index
    %c0_10 = arith.constant 0 : index
    %c0_11 = arith.constant 0 : index
    %22 = vector.load %arg15[%c0_8, %c0_9, %c0_10, %c0_11] : memref<1x1x8x16xf32, #tpu.memory_space<vmem>>, vector<1x1x8x16xf32>
    %23 = vector.shape_cast %22 : vector<1x1x8x16xf32> to vector<8x16xf32>
    %24 = vector.shape_cast %21 : vector<8x16xf32> to vector<1x1x8x16xf32>
    tpu.vector_store %arg15[%c0_8, %c0_9, %c0_10, %c0_11], %24 {strides = array<i32>} : memref<1x1x8x16xf32, #tpu.memory_space<vmem>>, vector<1x1x8x16xf32>,
    %25 = arith.truncf %21 : vector<8x16xf32> to vector<8x16xbf16>
    %cst_12 = arith.constant dense<0.000000e+00> : vector<8x8xf32>
    %26 = tpu.matmul %25, %11, %cst_12 {dimension_numbers = #tpu.dot_dimension_numbers<[1], [0], [0], [1], [0, 0, 1, 1], [], []>} : vector<8x16xbf16>, vector<16x8xbf16>, vector<8x8xf32> -> vector<8x8xf32>
    %c0_13 = arith.constant 0 : index
    %c0_14 = arith.constant 0 : index
    %27 = vector.load %arg19[%c0_13, %c0_14] : memref<8x32xf32, #tpu.memory_space<vmem>>, vector<8x32xf32>
    %28 = arith.truncf %26 : vector<8x8xf32> to vector<8x8xbf16>
    %29 = arith.index_cast %arg1 : i32 to index
    %c0_15 = arith.constant 0 : index
    %c0_16 = arith.constant 0 : index
    %30 = vector.load %arg12[%29, %c0_15, %c0_16] : memref<4x8x32xbf16, #tpu.memory_space<vmem>>, vector<1x8x32xbf16>
    %31 = vector.shape_cast %30 : vector<1x8x32xbf16> to vector<8x32xbf16>
    %cst_17 = arith.constant dense<0.000000e+00> : vector<8x32xf32>
    %32 = tpu.matmul %28, %31, %cst_17 {dimension_numbers = #tpu.dot_dimension_numbers<[1], [0], [0], [1], [0, 0, 1, 1], [], []>} : vector<8x8xbf16>, vector<8x32xbf16>, vector<8x32xf32> -> vector<8x32xf32>
    %33 = arith.addf %27, %32 : vector<8x32xf32>
    %c0_18 = arith.constant 0 : index
    %c0_19 = arith.constant 0 : index
    %34 = vector.load %arg19[%c0_18, %c0_19] : memref<8x32xf32, #tpu.memory_space<vmem>>, vector<8x32xf32>
    tpu.vector_store %arg19[%c0_18, %c0_19], %33 {strides = array<i32>} : memref<8x32xf32, #tpu.memory_space<vmem>>, vector<8x32xf32>,
    %c3_i32 = arith.constant 3 : i32
    %35 = arith.cmpi eq, %arg1, %c3_i32 : i32
    %36 = arith.extui %35 : i1 to i32
    %c0_i32_20 = arith.constant 0 : i32
    %37 = arith.cmpi ne, %36, %c0_i32_20 : i32
    scf.if %37 {
      %c0_21 = arith.constant 0 : index
      %c0_22 = arith.constant 0 : index
      %38 = vector.load %arg19[%c0_21, %c0_22] : memref<8x32xf32, #tpu.memory_space<vmem>>, vector<8x32xf32>
      %c0_23 = arith.constant 0 : index
      %c0_24 = arith.constant 0 : index
      %c0_25 = arith.constant 0 : index
      %39 = vector.load %arg14[%c0_23, %c0_24, %c0_25] : memref<1x8x32xf32, #tpu.memory_space<vmem>>, vector<1x8x32xf32>
      %40 = vector.shape_cast %39 : vector<1x8x32xf32> to vector<8x32xf32>
      %41 = vector.shape_cast %38 : vector<8x32xf32> to vector<1x8x32xf32>
      tpu.vector_store %arg14[%c0_23, %c0_24, %c0_25], %41 {strides = array<i32>} : memref<1x8x32xf32, #tpu.memory_space<vmem>>, vector<1x8x32xf32>,
    } else {
    }
    return
  }
  func.func @transform_0(%arg0: i32, %arg1: i32) -> (i32, i32, i32) {
    %c0_i32 = arith.constant 0 : i32
    %c0_i32_0 = arith.constant 0 : i32
    %c0_i32_1 = arith.constant 0 : i32
    return %arg0, %c0_i32, %c0_i32_0 : i32, i32, i32
  }
  func.func @transform_1(%arg0: i32, %arg1: i32) -> (i32, i32, i32) {
    %c0_i32 = arith.constant 0 : i32
    %c0_i32_0 = arith.constant 0 : i32
    %c0_i32_1 = arith.constant 0 : i32
    return %arg0, %c0_i32, %c0_i32_0 : i32, i32, i32
  }
  func.func @transform_2(%arg0: i32, %arg1: i32) -> (i32, i32) {
    %c0_i32 = arith.constant 0 : i32
    %c0_i32_0 = arith.constant 0 : i32
    %c0_i32_1 = arith.constant 0 : i32
    return %c0_i32, %c0_i32_0 : i32, i32
  }
  func.func @transform_3(%arg0: i32, %arg1: i32) -> (i32, i32) {
    %c0_i32 = arith.constant 0 : i32
    %c0_i32_0 = arith.constant 0 : i32
    %c0_i32_1 = arith.constant 0 : i32
    return %c0_i32, %c0_i32_0 : i32, i32
  }
  func.func @transform_4(%arg0: i32, %arg1: i32) -> (i32, i32) {
    %c0_i32 = arith.constant 0 : i32
    %c0_i32_0 = arith.constant 0 : i32
    %c0_i32_1 = arith.constant 0 : i32
    return %c0_i32, %c0_i32_0 : i32, i32
  }
  func.func @transform_5(%arg0: i32, %arg1: i32) -> (i32, i32) {
    %c0_i32 = arith.constant 0 : i32
    %c0_i32_0 = arith.constant 0 : i32
    %c0_i32_1 = arith.constant 0 : i32
    return %c0_i32, %c0_i32_0 : i32, i32
  }
  func.func @transform_6(%arg0: i32, %arg1: i32) -> (i32, i32) {
    %c0_i32 = arith.constant 0 : i32
    %c0_i32_0 = arith.constant 0 : i32
    %c0_i32_1 = arith.constant 0 : i32
    return %c0_i32, %c0_i32_0 : i32, i32
  }
  func.func @transform_7(%arg0: i32, %arg1: i32) -> (i32, i32) {
    %c0_i32 = arith.constant 0 : i32
    %c0_i32_0 = arith.constant 0 : i32
    %c0_i32_1 = arith.constant 0 : i32
    return %c0_i32, %c0_i32_0 : i32, i32
  }
  func.func @transform_8(%arg0: i32, %arg1: i32) -> (i32, i32) {
    %c0_i32 = arith.constant 0 : i32
    %c0_i32_0 = arith.constant 0 : i32
    %c0_i32_1 = arith.constant 0 : i32
    return %c0_i32, %c0_i32_0 : i32, i32
  }
  func.func @transform_9(%arg0: i32, %arg1: i32) -> (i32, i32) {
    %c0_i32 = arith.constant 0 : i32
    %c0_i32_0 = arith.constant 0 : i32
    %c0_i32_1 = arith.constant 0 : i32
    return %c0_i32, %c0_i32_0 : i32, i32
  }
  func.func @transform_10(%arg0: i32, %arg1: i32) -> (i32, i32, i32) {
    %c0_i32 = arith.constant 0 : i32
    %c0_i32_0 = arith.constant 0 : i32
    %c0_i32_1 = arith.constant 0 : i32
    %c0_i32_2 = arith.constant 0 : i32
    return %c0_i32, %c0_i32_0, %c0_i32_1 : i32, i32, i32
  }
  func.func @transform_11(%arg0: i32, %arg1: i32) -> (i32, i32) {
    %c0_i32 = arith.constant 0 : i32
    %c0_i32_0 = arith.constant 0 : i32
    %c0_i32_1 = arith.constant 0 : i32
    return %c0_i32, %c0_i32_0 : i32, i32
  }
  func.func @transform_12(%arg0: i32, %arg1: i32) -> (i32, i32, i32) {
    %c0_i32 = arith.constant 0 : i32
    %c0_i32_0 = arith.constant 0 : i32
    %c0_i32_1 = arith.constant 0 : i32
    return %arg0, %c0_i32, %c0_i32_0 : i32, i32, i32
  }
  func.func @transform_13(%arg0: i32, %arg1: i32) -> (i32, i32, i32, i32) {
    %c0_i32 = arith.constant 0 : i32
    %c0_i32_0 = arith.constant 0 : i32
    %c0_i32_1 = arith.constant 0 : i32
    return %arg0, %arg1, %c0_i32, %c0_i32_0 : i32, i32, i32, i32
  }
}

</mosaic_0001>

<llo_original>
// kernel: tpu_custom_call.1
$region0: #{tpu_custom_call.1}
  #allocation0 [shape = 'u32[]', space=smem, size = 0x4, offset = 0x4, fixed_abs, tag = 'smem constant byte address 0x4 - core index']
  #allocation1 [shape = 'u32[144,128]{1,0:T(1,128)}', space=vmem, size = 0x12000, scoped, tag = 'internal scratch']
  #allocation2 [shape = 'bf16[4,8,8]{2,1,0:T(8,128)(2,1)}', space=vmem, size = 0x2000, scoped, tag = 'scratch operand']
  #allocation3 [shape = 'bf16[4,16,8]{2,1,0:T(16,128)(2,1)}', space=vmem, size = 0x4000, scoped, tag = 'scratch operand']
  #allocation4 [shape = 'bf16[4,16,8]{2,1,0:T(16,128)(2,1)}', space=vmem, size = 0x4000, scoped, tag = 'scratch operand']
  #allocation5 [shape = 'f32[8,32]{1,0:T(8,128)}', space=vmem, size = 0x1000, scoped, tag = 'scratch operand']
  %s0 = inlined_call_operand.hbm [shape: f32[2,8,32], index: 0, kind: input, shape index: {}]
  %s1 = inlined_call_operand.hbm [shape: f32[2,16,48], index: 1, kind: input, shape index: {}]
  %s2 = inlined_call_operand.vmem [shape: f32[1,32], index: 2, kind: input, shape index: {}]
  %s3 = inlined_call_operand.vmem [shape: f32[1,32], index: 3, kind: input, shape index: {}]
  %s4 = inlined_call_operand.vmem [shape: f32[1,48], index: 4, kind: input, shape index: {}]
  %s5 = inlined_call_operand.vmem [shape: f32[1,48], index: 5, kind: input, shape index: {}]
  %s6 = inlined_call_operand.hbm [shape: bf16[32,32], index: 6, kind: input, shape index: {}]
  %s7 = inlined_call_operand.vmem [shape: f32[1,32], index: 7, kind: input, shape index: {}]
  %s8 = inlined_call_operand.vmem [shape: bf16[48,64], index: 8, kind: input, shape index: {}]
  %s9 = inlined_call_operand.vmem [shape: f32[1,64], index: 9, kind: input, shape index: {}]
  %s10 = inlined_call_operand.hbm [shape: bf16[4,8,32], index: 10, kind: input, shape index: {}]
  %s11 = inlined_call_operand.vmem [shape: f32[1,32], index: 11, kind: input, shape index: {}]
  %s12 = inlined_call_operand.hbm [shape: f32[2,8,32], index: 12, kind: output, shape index: {0}]
  %s13 = inlined_call_operand.hbm [shape: f32[2,4,8,16], index: 13, kind: output, shape index: {1}]
  %14 = xla_tuple %s12, %s13
  %s15 = sld [smem:[#allocation0]]
  $region113: #{tpu_custom_call.1} parent=0
    _
  %s17 = ssub.s32 1, %s15
  %s18 = scalar_select 0, %s17, %s15
  $region1: #{tpu_custom_call.1} parent=0
    #allocation6 [shape = 'u8[8192]{0}', space=vmem, size = 0x2000, scoped, tag = 'input window, operand 0']
    #allocation7 [shape = 's32[2]{0}', space=sflag, size = 0x8, scoped, tag = 'scoped memory for tpu_custom_call.1']
    #allocation8 [shape = 's32[2]{0}', space=sflag, size = 0x8, scoped, tag = 'scoped memory for tpu_custom_call.1']
    #allocation9 [shape = 'u8[16384]{0}', space=vmem, size = 0x4000, scoped, tag = 'input window, operand 1']
    #allocation10 [shape = 's32[2]{0}', space=sflag, size = 0x8, scoped, tag = 'scoped memory for tpu_custom_call.1']
    #allocation11 [shape = 'u8[8192]{0}', space=vmem, size = 0x2000, scoped, tag = 'input window, operand 6, single buffered']
    #allocation12 [shape = 'u8[8192]{0}', space=vmem, size = 0x2000, scoped, tag = 'input window, operand 10, single buffered']
    #allocation13 [shape = 's32[1]{0}', space=sflag, size = 0x4, scoped, tag = 'scoped memory for tpu_custom_call.1']
    #allocation14 [shape = 'u8[8192]{0}', space=vmem, size = 0x2000, scoped, tag = 'output window, operand 0']
    #allocation15 [shape = 'u8[8192]{0}', space=vmem, size = 0x2000, scoped, tag = 'output window, operand 1']
    #allocation16 [shape = 's32[2]{0}', space=sflag, size = 0x8, scoped, tag = 'scoped memory for tpu_custom_call.1']
    %19 = vsyncpa [#allocation7], 0
    %s20 = scalar_lea.sflag [#allocation7], 1
    %21 = vsyncpa %s20, 0
    %22 = vsyncpa [#allocation10], 0
    %s23 = scalar_lea.sflag [#allocation10], 1
    %24 = vsyncpa %s23, 0
    %25 = vsyncpa [#allocation13], 0
    %26 = vsyncpa [#allocation8], 0
    %s27 = scalar_lea.sflag [#allocation8], 1
    %28 = vsyncpa %s27, 0
    %29 = vsyncpa [#allocation16], 0
    %s30 = scalar_lea.sflag [#allocation16], 1
    %31 = vsyncpa %s30, 0
    loop: start=0, step=1, limit=10
    $region2: #{tpu_custom_call.1} parent=1 // loop_pre_header
      _
    $region3: #{tpu_custom_call.1} parent=1 // loop_header
      %s33 = sphi 0, %s37
      %p34 = scmp.ge.s32.totalorder %s33, 10
      %s40 = sphi 0, %s52
      %s41 = sphi 0, %s48
      %s42 = sphi 0, %s40
      %s43 = sphi 0, %s41
      %s44 = sphi 0, %s42
      %s45 = sphi 0, %s43
      %s55 = sphi 0, %s57
      %s58 = sphi 0, %s55
      %s59 = sphi 0, %s58
      %s75 = sphi 0, %s59
      %s81 = sphi 0, %s83
      %s84 = sphi 0, %s81
      %s85 = sphi 0, %s84
      %s101 = sphi 0, %s85
      %s105 = sphi 0, %s105
      %s107 = sphi 0, %s105
      %s108 = sphi 0, %s107
      %s122 = sphi 0, %s108
      %s126 = sphi 0, %s126
      %s128 = sphi 0, %s126
      %s129 = sphi 0, %s128
      %s143 = sphi 0, %s129
      %s147 = sphi 0, %s147
      %s149 = sphi 0, %s147
      %s150 = sphi 0, %s149
      %s164 = sphi 0, %s150
      %s168 = sphi 0, %s168
      %s170 = sphi 0, %s168
      %s171 = sphi 0, %s170
      %s185 = sphi 0, %s171
      %s189 = sphi 0, %s189
      %s191 = sphi 0, %s189
      %s192 = sphi 0, %s191
      %s206 = sphi 0, %s192
      %s210 = sphi 0, %s210
      %s212 = sphi 0, %s210
      %s213 = sphi 0, %s212
      %s227 = sphi 0, %s213
      %s231 = sphi 0, %s231
      %s233 = sphi 0, %s231
      %s234 = sphi 0, %s233
      %s248 = sphi 0, %s234
      %s252 = sphi 0, %s252
      %s254 = sphi 0, %s252
      %s255 = sphi 0, %s254
      %s269 = sphi 0, %s255
      %s273 = sphi 0, %s273
      %s275 = sphi 0, %s273
      %s276 = sphi 0, %s275
      %s290 = sphi 0, %s276
      %s294 = sphi 0, %s294
      %s296 = sphi 0, %s294
      %s297 = sphi 0, %s296
      %s311 = sphi 0, %s297
      %s317 = sphi 0, %s319
      %s320 = sphi 0, %s317
      %s321 = sphi 0, %s320
      %s337 = sphi 0, %s321
      %s345 = sphi 0, %s347
      %s348 = sphi 0, %s345
      %s349 = sphi 0, %s348
      %s365 = sphi 0, %s349
    $region4: #{tpu_custom_call.1} parent=1 // loop_header_branch
      %36 = sbr.rel (%p34) target = $region8
    $region5: #{tpu_custom_call.1} parent=1 // loop_body
      %s38 = ssub.s32 %s33, 1
      %s39 = ssub.s32 %s33, 2
      %s46 = sadd.s32 1, %s41
      %p47 = scmp.ge.s32.totalorder %s46, 4
      %s48 = scalar_select %p47, 0, %s46
      %s49 = sadd.s32 1, %s40
      %s50 = scalar_select %p47, %s49, %s40
      %p51 = scmp.ge.s32.totalorder %s50, 2
      %s52 = scalar_select %p51, 0, %s50
      %s53 = ssub.s32 %s40, %s52
      %p54 = scmp.eq.s32.totalorder %s53, 0
      %s56 = sadd.s32 %s55, 1
      %s57 = scalar_select %p54, %s55, %s56
      %p60 = pneg %p54
      %p61 = scmp.eq.s32.totalorder %s33, 7
      %p62 = por %p60, %p61
      %p63 = scmp.ne.s32.totalorder %s55, %s58
      %p64 = scmp.eq.s32.totalorder %s33, 0
      %p65 = por %p63, %p64
      %p66 = scmp.ne.s32.totalorder %s55, %s58
      %p67 = scmp.eq.s32.totalorder %s38, 7
      %p68 = por %p66, %p67
      %p69 = scmp.ne.s32.totalorder %s58, %s59
      %p70 = scmp.eq.s32.totalorder %s38, 0
      %p71 = por %p69, %p70
      %p72 = scmp.ne.s32.totalorder %s58, %s59
      %p73 = scmp.eq.s32.totalorder %s39, 7
      %p74 = por %p72, %p73
      %p76 = scmp.ne.s32.totalorder %s59, %s75
      %p77 = scmp.eq.s32.totalorder %s39, 0
      %p78 = por %p76, %p77
      %s79 = ssub.s32 %s40, %s52
      %p80 = scmp.eq.s32.totalorder %s79, 0
      %s82 = sadd.s32 %s81, 1
      %s83 = scalar_select %p80, %s81, %s82
      %p86 = pneg %p80
      %p87 = scmp.eq.s32.totalorder %s33, 7
      %p88 = por %p86, %p87
      %p89 = scmp.ne.s32.totalorder %s81, %s84
      %p90 = scmp.eq.s32.totalorder %s33, 0
      %p91 = por %p89, %p90
      %p92 = scmp.ne.s32.totalorder %s81, %s84
      %p93 = scmp.eq.s32.totalorder %s38, 7
      %p94 = por %p92, %p93
      %p95 = scmp.ne.s32.totalorder %s84, %s85
      %p96 = scmp.eq.s32.totalorder %s38, 0
      %p97 = por %p95, %p96
      %p98 = scmp.ne.s32.totalorder %s84, %s85
      %p99 = scmp.eq.s32.totalorder %s39, 7
      %p100 = por %p98, %p99
      %p102 = scmp.ne.s32.totalorder %s85, %s101
      %p103 = scmp.eq.s32.totalorder %s39, 0
      %p104 = por %p102, %p103
      %s106 = sadd.s32 %s105, 1
      %p109 = scmp.eq.s32.totalorder %s33, 7
      %p110 = scmp.ne.s32.totalorder %s105, %s107
      %p111 = scmp.eq.s32.totalorder %s33, 0
      %p112 = por %p110, %p111
      %p113 = scmp.ne.s32.totalorder %s105, %s107
      %p114 = scmp.eq.s32.totalorder %s38, 7
      %p115 = por %p113, %p114
      %p116 = scmp.ne.s32.totalorder %s107, %s108
      %p117 = scmp.eq.s32.totalorder %s38, 0
      %p118 = por %p116, %p117
      %p119 = scmp.ne.s32.totalorder %s107, %s108
      %p120 = scmp.eq.s32.totalorder %s39, 7
      %p121 = por %p119, %p120
      %p123 = scmp.ne.s32.totalorder %s108, %s122
      %p124 = scmp.eq.s32.totalorder %s39, 0
      %p125 = por %p123, %p124
      %s127 = sadd.s32 %s126, 1
      %p130 = scmp.eq.s32.totalorder %s33, 7
      %p131 = scmp.ne.s32.totalorder %s126, %s128
      %p132 = scmp.eq.s32.totalorder %s33, 0
      %p133 = por %p131, %p132
      %p134 = scmp.ne.s32.totalorder %s126, %s128
      %p135 = scmp.eq.s32.totalorder %s38, 7
      %p136 = por %p134, %p135
      %p137 = scmp.ne.s32.totalorder %s128, %s129
      %p138 = scmp.eq.s32.totalorder %s38, 0
      %p139 = por %p137, %p138
      %p140 = scmp.ne.s32.totalorder %s128, %s129
      %p141 = scmp.eq.s32.totalorder %s39, 7
      %p142 = por %p140, %p141
      %p144 = scmp.ne.s32.totalorder %s129, %s143
      %p145 = scmp.eq.s32.totalorder %s39, 0
      %p146 = por %p144, %p145
      %s148 = sadd.s32 %s147, 1
      %p151 = scmp.eq.s32.totalorder %s33, 7
      %p152 = scmp.ne.s32.totalorder %s147, %s149
      %p153 = scmp.eq.s32.totalorder %s33, 0
      %p154 = por %p152, %p153
      %p155 = scmp.ne.s32.totalorder %s147, %s149
      %p156 = scmp.eq.s32.totalorder %s38, 7
      %p157 = por %p155, %p156
      %p158 = scmp.ne.s32.totalorder %s149, %s150
      %p159 = scmp.eq.s32.totalorder %s38, 0
      %p160 = por %p158, %p159
      %p161 = scmp.ne.s32.totalorder %s149, %s150
      %p162 = scmp.eq.s32.totalorder %s39, 7
      %p163 = por %p161, %p162
      %p165 = scmp.ne.s32.totalorder %s150, %s164
      %p166 = scmp.eq.s32.totalorder %s39, 0
      %p167 = por %p165, %p166
      %s169 = sadd.s32 %s168, 1
      %p172 = scmp.eq.s32.totalorder %s33, 7
      %p173 = scmp.ne.s32.totalorder %s168, %s170
      %p174 = scmp.eq.s32.totalorder %s33, 0
      %p175 = por %p173, %p174
      %p176 = scmp.ne.s32.totalorder %s168, %s170
      %p177 = scmp.eq.s32.totalorder %s38, 7
      %p178 = por %p176, %p177
      %p179 = scmp.ne.s32.totalorder %s170, %s171
      %p180 = scmp.eq.s32.totalorder %s38, 0
      %p181 = por %p179, %p180
      %p182 = scmp.ne.s32.totalorder %s170, %s171
      %p183 = scmp.eq.s32.totalorder %s39, 7
      %p184 = por %p182, %p183
      %p186 = scmp.ne.s32.totalorder %s171, %s185
      %p187 = scmp.eq.s32.totalorder %s39, 0
      %p188 = por %p186, %p187
      %s190 = sadd.s32 %s189, 1
      %p193 = scmp.eq.s32.totalorder %s33, 7
      %p194 = scmp.ne.s32.totalorder %s189, %s191
      %p195 = scmp.eq.s32.totalorder %s33, 0
      %p196 = por %p194, %p195
      %p197 = scmp.ne.s32.totalorder %s189, %s191
      %p198 = scmp.eq.s32.totalorder %s38, 7
      %p199 = por %p197, %p198
      %p200 = scmp.ne.s32.totalorder %s191, %s192
      %p201 = scmp.eq.s32.totalorder %s38, 0
      %p202 = por %p200, %p201
      %p203 = scmp.ne.s32.totalorder %s191, %s192
      %p204 = scmp.eq.s32.totalorder %s39, 7
      %p205 = por %p203, %p204
      %p207 = scmp.ne.s32.totalorder %s192, %s206
      %p208 = scmp.eq.s32.totalorder %s39, 0
      %p209 = por %p207, %p208
      %s211 = sadd.s32 %s210, 1
      %p214 = scmp.eq.s32.totalorder %s33, 7
      %p215 = scmp.ne.s32.totalorder %s210, %s212
      %p216 = scmp.eq.s32.totalorder %s33, 0
      %p217 = por %p215, %p216
      %p218 = scmp.ne.s32.totalorder %s210, %s212
      %p219 = scmp.eq.s32.totalorder %s38, 7
      %p220 = por %p218, %p219
      %p221 = scmp.ne.s32.totalorder %s212, %s213
      %p222 = scmp.eq.s32.totalorder %s38, 0
      %p223 = por %p221, %p222
      %p224 = scmp.ne.s32.totalorder %s212, %s213
      %p225 = scmp.eq.s32.totalorder %s39, 7
      %p226 = por %p224, %p225
      %p228 = scmp.ne.s32.totalorder %s213, %s227
      %p229 = scmp.eq.s32.totalorder %s39, 0
      %p230 = por %p228, %p229
      %s232 = sadd.s32 %s231, 1
      %p235 = scmp.eq.s32.totalorder %s33, 7
      %p236 = scmp.ne.s32.totalorder %s231, %s233
      %p237 = scmp.eq.s32.totalorder %s33, 0
      %p238 = por %p236, %p237
      %p239 = scmp.ne.s32.totalorder %s231, %s233
      %p240 = scmp.eq.s32.totalorder %s38, 7
      %p241 = por %p239, %p240
      %p242 = scmp.ne.s32.totalorder %s233, %s234
      %p243 = scmp.eq.s32.totalorder %s38, 0
      %p244 = por %p242, %p243
      %p245 = scmp.ne.s32.totalorder %s233, %s234
      %p246 = scmp.eq.s32.totalorder %s39, 7
      %p247 = por %p245, %p246
      %p249 = scmp.ne.s32.totalorder %s234, %s248
      %p250 = scmp.eq.s32.totalorder %s39, 0
      %p251 = por %p249, %p250
      %s253 = sadd.s32 %s252, 1
      %p256 = scmp.eq.s32.totalorder %s33, 7
      %p257 = scmp.ne.s32.totalorder %s252, %s254
      %p258 = scmp.eq.s32.totalorder %s33, 0
      %p259 = por %p257, %p258
      %p260 = scmp.ne.s32.totalorder %s252, %s254
      %p261 = scmp.eq.s32.totalorder %s38, 7
      %p262 = por %p260, %p261
      %p263 = scmp.ne.s32.totalorder %s254, %s255
      %p264 = scmp.eq.s32.totalorder %s38, 0
      %p265 = por %p263, %p264
      %p266 = scmp.ne.s32.totalorder %s254, %s255
      %p267 = scmp.eq.s32.totalorder %s39, 7
      %p268 = por %p266, %p267
      %p270 = scmp.ne.s32.totalorder %s255, %s269
      %p271 = scmp.eq.s32.totalorder %s39, 0
      %p272 = por %p270, %p271
      %s274 = sadd.s32 %s273, 1
      %p277 = scmp.eq.s32.totalorder %s33, 7
      %p278 = scmp.ne.s32.totalorder %s273, %s275
      %p279 = scmp.eq.s32.totalorder %s33, 0
      %p280 = por %p278, %p279
      %p281 = scmp.ne.s32.totalorder %s273, %s275
      %p282 = scmp.eq.s32.totalorder %s38, 7
      %p283 = por %p281, %p282
      %p284 = scmp.ne.s32.totalorder %s275, %s276
      %p285 = scmp.eq.s32.totalorder %s38, 0
      %p286 = por %p284, %p285
      %p287 = scmp.ne.s32.totalorder %s275, %s276
      %p288 = scmp.eq.s32.totalorder %s39, 7
      %p289 = por %p287, %p288
      %p291 = scmp.ne.s32.totalorder %s276, %s290
      %p292 = scmp.eq.s32.totalorder %s39, 0
      %p293 = por %p291, %p292
      %s295 = sadd.s32 %s294, 1
      %p298 = scmp.eq.s32.totalorder %s33, 7
      %p299 = scmp.ne.s32.totalorder %s294, %s296
      %p300 = scmp.eq.s32.totalorder %s33, 0
      %p301 = por %p299, %p300
      %p302 = scmp.ne.s32.totalorder %s294, %s296
      %p303 = scmp.eq.s32.totalorder %s38, 7
      %p304 = por %p302, %p303
      %p305 = scmp.ne.s32.totalorder %s296, %s297
      %p306 = scmp.eq.s32.totalorder %s38, 0
      %p307 = por %p305, %p306
      %p308 = scmp.ne.s32.totalorder %s296, %s297
      %p309 = scmp.eq.s32.totalorder %s39, 7
      %p310 = por %p308, %p309
      %p312 = scmp.ne.s32.totalorder %s297, %s311
      %p313 = scmp.eq.s32.totalorder %s39, 0
      %p314 = por %p312, %p313
      %s315 = ssub.s32 %s40, %s52
      %p316 = scmp.eq.s32.totalorder %s315, 0
      %s318 = sadd.s32 %s317, 1
      %s319 = scalar_select %p316, %s317, %s318
      %p322 = pneg %p316
      %p323 = scmp.eq.s32.totalorder %s33, 7
      %p324 = por %p322, %p323
      %p325 = scmp.ne.s32.totalorder %s317, %s320
      %p326 = scmp.eq.s32.totalorder %s33, 0
      %p327 = por %p325, %p326
      %p328 = scmp.ne.s32.totalorder %s317, %s320
      %p329 = scmp.eq.s32.totalorder %s38, 7
      %p330 = por %p328, %p329
      %p331 = scmp.ne.s32.totalorder %s320, %s321
      %p332 = scmp.eq.s32.totalorder %s38, 0
      %p333 = por %p331, %p332
      %p334 = scmp.ne.s32.totalorder %s320, %s321
      %p335 = scmp.eq.s32.totalorder %s39, 7
      %p336 = por %p334, %p335
      %p338 = scmp.ne.s32.totalorder %s321, %s337
      %p339 = scmp.eq.s32.totalorder %s39, 0
      %p340 = por %p338, %p339
      %s341 = ssub.s32 %s40, %s52
      %s342 = ssub.s32 %s41, %s48
      %s343 = sor.u32 %s341, %s342
      %p344 = scmp.eq.s32.totalorder %s343, 0
      %s346 = sadd.s32 %s345, 1
      %s347 = scalar_select %p344, %s345, %s346
      %p350 = pneg %p344
      %p351 = scmp.eq.s32.totalorder %s33, 7
      %p352 = por %p350, %p351
      %p353 = scmp.ne.s32.totalorder %s345, %s348
      %p354 = scmp.eq.s32.totalorder %s33, 0
      %p355 = por %p353, %p354
      %p356 = scmp.ne.s32.totalorder %s345, %s348
      %p357 = scmp.eq.s32.totalorder %s38, 7
      %p358 = por %p356, %p357
      %p359 = scmp.ne.s32.totalorder %s348, %s349
      %p360 = scmp.eq.s32.totalorder %s38, 0
      %p361 = por %p359, %p360
      %p362 = scmp.ne.s32.totalorder %s348, %s349
      %p363 = scmp.eq.s32.totalorder %s39, 7
      %p364 = por %p362, %p363
      %p366 = scmp.ne.s32.totalorder %s349, %s365
      %p367 = scmp.eq.s32.totalorder %s39, 0
      %p368 = por %p366, %p367
      %p369 = scmp.le.s32.totalorder 1, %s33
      %p370 = scmp.lt.s32.totalorder %s33, 9
      %p371 = pnand %p369, %p370
      %p372 = pneg %p371
      // Predicated region
      $region9: #{tpu_custom_call.1} parent=5 // pred_check
        _
      $region10: #{tpu_custom_call.1} parent=5 // pred_check_branch
        %374 = sbr.rel (%p371) target = $region12
      $region11: #{tpu_custom_call.1} parent=5 // pred_region
        %s375 = ssub.s32 %s33, 1
        // Predicated region
        $region13: #{tpu_custom_call.1} parent=11 // pred_check
          %p376 = pneg %p118
        $region14: #{tpu_custom_call.1} parent=11 // pred_check_branch
          %378 = sbr.rel (%p376) target = $region16
        $region15: #{tpu_custom_call.1} parent=11 // pred_region
          _
        $region16: #{tpu_custom_call.1} parent=11 // pred_fallthru
          _
        // Predicated region
        $region17: #{tpu_custom_call.1} parent=11 // pred_check
          %p379 = pneg %p139
        $region18: #{tpu_custom_call.1} parent=11 // pred_check_branch
          %381 = sbr.rel (%p379) target = $region20
        $region19: #{tpu_custom_call.1} parent=11 // pred_region
          _
        $region20: #{tpu_custom_call.1} parent=11 // pred_fallthru
          _
        // Predicated region
        $region21: #{tpu_custom_call.1} parent=11 // pred_check
          %p382 = pneg %p160
        $region22: #{tpu_custom_call.1} parent=11 // pred_check_branch
          %384 = sbr.rel (%p382) target = $region24
        $region23: #{tpu_custom_call.1} parent=11 // pred_region
          _
        $region24: #{tpu_custom_call.1} parent=11 // pred_fallthru
          _
        // Predicated region
        $region25: #{tpu_custom_call.1} parent=11 // pred_check
          %p385 = pneg %p181
        $region26: #{tpu_custom_call.1} parent=11 // pred_check_branch
          %387 = sbr.rel (%p385) target = $region28
        $region27: #{tpu_custom_call.1} parent=11 // pred_region
          _
        $region28: #{tpu_custom_call.1} parent=11 // pred_fallthru
          _
        // Predicated region
        $region29: #{tpu_custom_call.1} parent=11 // pred_check
          %p388 = pneg %p202
        $region30: #{tpu_custom_call.1} parent=11 // pred_check_branch
          %390 = sbr.rel (%p388) target = $region32
        $region31: #{tpu_custom_call.1} parent=11 // pred_region
          %s392 = ssub.s32 256, 256
          %393 = vsyncadd [#allocation10], %s392
          %s394 = sshll.u32 [#allocation11], 4
          %s395 = int_to_ptr.vmem [resolvable:$true] %s394
          %400 = dma.hbm_to_vmem [thread:$0]  %s6, 256, %s395, [#allocation10], 64, 64, 4
        $region32: #{tpu_custom_call.1} parent=11 // pred_fallthru
          _
        // Predicated region
        $region33: #{tpu_custom_call.1} parent=11 // pred_check
          %p401 = pneg %p223
        $region34: #{tpu_custom_call.1} parent=11 // pred_check_branch
          %403 = sbr.rel (%p401) target = $region36
        $region35: #{tpu_custom_call.1} parent=11 // pred_region
          _
        $region36: #{tpu_custom_call.1} parent=11 // pred_fallthru
          _
        // Predicated region
        $region37: #{tpu_custom_call.1} parent=11 // pred_check
          %p404 = pneg %p244
        $region38: #{tpu_custom_call.1} parent=11 // pred_check_branch
          %406 = sbr.rel (%p404) target = $region40
        $region39: #{tpu_custom_call.1} parent=11 // pred_region
          _
        $region40: #{tpu_custom_call.1} parent=11 // pred_fallthru
          _
        // Predicated region
        $region41: #{tpu_custom_call.1} parent=11 // pred_check
          %p407 = pneg %p265
        $region42: #{tpu_custom_call.1} parent=11 // pred_check_branch
          %409 = sbr.rel (%p407) target = $region44
        $region43: #{tpu_custom_call.1} parent=11 // pred_region
          _
        $region44: #{tpu_custom_call.1} parent=11 // pred_fallthru
          _
        // Predicated region
        $region45: #{tpu_custom_call.1} parent=11 // pred_check
          %p410 = pneg %p286
        $region46: #{tpu_custom_call.1} parent=11 // pred_check_branch
          %412 = sbr.rel (%p410) target = $region48
        $region47: #{tpu_custom_call.1} parent=11 // pred_region
          %s414 = ssub.s32 256, 256
          %415 = vsyncadd [#allocation13], %s414
          %s416 = sshll.u32 [#allocation12], 4
          %s417 = int_to_ptr.vmem [resolvable:$true] %s416
          %422 = dma.hbm_to_vmem [thread:$0]  %s10, 256, %s417, [#allocation13], 64, 64, 4
        $region48: #{tpu_custom_call.1} parent=11 // pred_fallthru
          _
        // Predicated region
        $region49: #{tpu_custom_call.1} parent=11 // pred_check
          %p423 = pneg %p307
        $region50: #{tpu_custom_call.1} parent=11 // pred_check_branch
          %425 = sbr.rel (%p423) target = $region52
        $region51: #{tpu_custom_call.1} parent=11 // pred_region
          _
        $region52: #{tpu_custom_call.1} parent=11 // pred_fallthru
          _
      $region12: #{tpu_custom_call.1} parent=5 // pred_fallthru
        _
      %p426 = scmp.lt.s32.totalorder %s33, 8
      // Predicated region
      $region53: #{tpu_custom_call.1} parent=5 // pred_check
        %p427 = pneg %p426
      $region54: #{tpu_custom_call.1} parent=5 // pred_check_branch
        %429 = sbr.rel (%p427) target = $region56
      $region55: #{tpu_custom_call.1} parent=5 // pred_region
        // Predicated region
        $region57: #{tpu_custom_call.1} parent=55 // pred_check
          %p430 = pneg %p65
        $region58: #{tpu_custom_call.1} parent=55 // pred_check_branch
          %432 = sbr.rel (%p430) target = $region60
        $region59: #{tpu_custom_call.1} parent=55 // pred_region
          %s433 = sand.u32 %s55, 1
          %s434 = scalar_lea.sflag [#allocation7], %s433
          %s435 = sand.u32 %s55, 1
          %s436 = smul.addr %s435, 8
          %s437 = scalar_lea.vmem [#allocation6], %s436
          %s439 = ssub.s32 128, 128
          %440 = vsyncadd %s434, %s439
          %s441 = smul.addr %s40, 128
          %s442 = scalar_lea.hbm %s0, %s441
          %s444 = sshll.u32 %s437, 4
          %s445 = int_to_ptr.vmem [resolvable:$true] %s444
          %447 = dma.hbm_to_vmem [thread:$0]  %s442, 128, %s445, %s434
        $region60: #{tpu_custom_call.1} parent=55 // pred_fallthru
          _
        // Predicated region
        $region61: #{tpu_custom_call.1} parent=55 // pred_check
          %p448 = pneg %p91
        $region62: #{tpu_custom_call.1} parent=55 // pred_check_branch
          %450 = sbr.rel (%p448) target = $region64
        $region63: #{tpu_custom_call.1} parent=55 // pred_region
          %s451 = sand.u32 %s33, 1
          %s452 = scalar_lea.sflag [#allocation10], %s451
          %s453 = sand.u32 %s81, 1
          %s454 = smul.addr %s453, 16
          %s455 = scalar_lea.vmem [#allocation9], %s454
          %s457 = ssub.s32 256, 256
          %458 = vsyncadd %s452, %s457
          %s459 = smul.addr %s40, 2
          %s460 = smul.addr %s459, 128
          %s461 = scalar_lea.hbm %s1, %s460
          %s462 = sshll.u32 %s455, 4
          %s463 = int_to_ptr.vmem [resolvable:$true] %s462
          %468 = dma.hbm_to_vmem [thread:$0]  %s461, 256, %s463, %s452, 128, 128, 8
        $region64: #{tpu_custom_call.1} parent=55 // pred_fallthru
          _
      $region56: #{tpu_custom_call.1} parent=5 // pred_fallthru
        _
      %p469 = scmp.le.s32.totalorder 1, %s33
      %p470 = scmp.lt.s32.totalorder %s33, 9
      %p471 = pnand %p469, %p470
      %p472 = pneg %p471
      // Predicated region
      $region65: #{tpu_custom_call.1} parent=5 // pred_check
        _
      $region66: #{tpu_custom_call.1} parent=5 // pred_check_branch
        %474 = sbr.rel (%p471) target = $region68
      $region67: #{tpu_custom_call.1} parent=5 // pred_region
        %s475 = ssub.s32 %s33, 1
        %s476 = sand.u32 %s58, 1
        %s477 = scalar_lea.sflag [#allocation7], %s476
        %s478 = sand.u32 %s58, 1
        %s479 = smul.addr %s478, 8
        %s480 = scalar_lea.vmem [#allocation6], %s479
        // Predicated region
        $region69: #{tpu_custom_call.1} parent=67 // pred_check
          %p481 = pneg %p71
        $region70: #{tpu_custom_call.1} parent=67 // pred_check_branch
          %483 = sbr.rel (%p481) target = $region72
        $region71: #{tpu_custom_call.1} parent=67 // pred_region
          %484 = dma.done %s477, 128
        $region72: #{tpu_custom_call.1} parent=67 // pred_fallthru
          _
        %s485 = sand.u32 %s38, 1
        %s486 = scalar_lea.sflag [#allocation10], %s485
        %s487 = sand.u32 %s84, 1
        %s488 = smul.addr %s487, 16
        %s489 = scalar_lea.vmem [#allocation9], %s488
        // Predicated region
        $region73: #{tpu_custom_call.1} parent=67 // pred_check
          %p490 = pneg %p97
        $region74: #{tpu_custom_call.1} parent=67 // pred_check_branch
          %492 = sbr.rel (%p490) target = $region76
        $region75: #{tpu_custom_call.1} parent=67 // pred_region
          %493 = dma.done %s486, 256
        $region76: #{tpu_custom_call.1} parent=67 // pred_fallthru
          _
        // Predicated region
        $region77: #{tpu_custom_call.1} parent=67 // pred_check
          %p494 = pneg %p202
        $region78: #{tpu_custom_call.1} parent=67 // pred_check_branch
          %496 = sbr.rel (%p494) target = $region80
        $region79: #{tpu_custom_call.1} parent=67 // pred_region
          %497 = dma.done [#allocation10], 256
        $region80: #{tpu_custom_call.1} parent=67 // pred_fallthru
          _
        // Predicated region
        $region81: #{tpu_custom_call.1} parent=67 // pred_check
          %p498 = pneg %p286
        $region82: #{tpu_custom_call.1} parent=67 // pred_check_branch
          %500 = sbr.rel (%p498) target = $region84
        $region83: #{tpu_custom_call.1} parent=67 // pred_region
          %501 = dma.done [#allocation13], 256
        $region84: #{tpu_custom_call.1} parent=67 // pred_fallthru
          _
        %s502 = sand.u32 %s58, 1
        %s503 = scalar_lea.sflag [#allocation7], %s502
        %s504 = sand.u32 %s58, 1
        %s505 = smul.addr %s504, 8
        %s506 = scalar_lea.vmem [#allocation6], %s505
        %p507 = pneg %p71
        %p508 = pneg %p68
        %s509 = sand.u32 %s38, 1
        %s510 = scalar_lea.sflag [#allocation10], %s509
        %s511 = sand.u32 %s84, 1
        %s512 = smul.addr %s511, 16
        %s513 = scalar_lea.vmem [#allocation9], %s512
        %p514 = pneg %p97
        %p515 = pneg %p94
        %p516 = pneg %p118
        %p517 = pneg %p115
        %p518 = pneg %p139
        %p519 = pneg %p136
        %p520 = pneg %p160
        %p521 = pneg %p157
        %p522 = pneg %p181
        %p523 = pneg %p178
        %p524 = pneg %p202
        %p525 = pneg %p199
        %p526 = pneg %p223
        %p527 = pneg %p220
        %p528 = pneg %p244
        %p529 = pneg %p241
        %p530 = pneg %p265
        %p531 = pneg %p262
        %p532 = pneg %p286
        %p533 = pneg %p283
        %p534 = pneg %p307
        %p535 = pneg %p304
        %p536 = pneg %p333
        %p537 = pneg %p330
        %s538 = sand.u32 %s320, 1
        %s539 = scalar_lea.sflag [#allocation8], %s538
        %s540 = sand.u32 %s320, 1
        %s541 = smul.addr %s540, 8
        %s542 = scalar_lea.vmem [#allocation14], %s541
        %p543 = pneg %p361
        %p544 = pneg %p358
        %s545 = sand.u32 %s348, 1
        %s546 = scalar_lea.sflag [#allocation16], %s545
        %s547 = sand.u32 %s348, 1
        %s548 = smul.addr %s547, 8
        %s549 = scalar_lea.vmem [#allocation15], %s548
        %p551 = scmp.eq.s32.totalorder %s43, 0
        // Predicated region
        $region85: #{tpu_custom_call.1} parent=67 // pred_check
          %p552 = pneg %p551
        $region86: #{tpu_custom_call.1} parent=67 // pred_check_branch
          %554 = sbr.rel (%p552) target = $region88
        $region87: #{tpu_custom_call.1} parent=67 // pred_region
          %v555 = vld [vmem:[%s480] sm:$0xff]
          %v556 = vld [vmem:[%s489] sm:$0xff]
          %v557 = vld [vmem:[%s489 + $0x8] sm:$0xff]
          %v558 = vld [vmem:[%s2] sm:$0x1]
          %v559 = vld [vmem:[%s3] sm:$0x1]
          %vm560 = vcmask 261120
          %v561 = vsel %vm560, %v555, 0.0
          %562 = vadd.xlane.f32.xlu0 %v561
          %v563 = vpop.xlane.xlu0 %562
          %v564 = vrcp.pop 32.0
          %v565 = vmul.f32 %v563, %v564
          %v566 = vsub.f32 %v555, %v565
          %v567 = vmul.f32 %v566, %v566
          %v568 = vsel %vm560, %v567, 0.0
          %569 = vadd.xlane.f32.xlu0 %v568
          %v570 = vpop.xlane.xlu0 %569
          %v571 = vmul.f32 %v570, %v564
          %v572 = vadd.f32 %v571, 1e-05
          %v573 = vrsqrt.pop %v572
          %v574 = vmul.f32 %v566, %v573
          %v576 = vlaneseq
          %v577 = vshrl.u32 %v576, 7
          %v578 = vsub.s32 0, %v577
          %v579 = vrot.slane %v558, %v578
          %v581 = vmul.f32 %v574, %v579
          %v583 = vlaneseq
          %v584 = vshrl.u32 %v583, 7
          %v585 = vsub.s32 0, %v584
          %v586 = vrot.slane %v559, %v585
          %v588 = vadd.f32 %v581, %v586
          %v589 = vld [vmem:[%s4] sm:$0x1]
          %v590 = vld [vmem:[%s5] sm:$0x1]
          %vm591 = vcmask 392192
          %v592 = vsel %vm591, %v556, 0.0
          %593 = vadd.xlane.f32.xlu0 %v592
          %v594 = vpop.xlane.xlu0 %593
          %v595 = vsel %vm591, %v557, 0.0
          %596 = vadd.xlane.f32.xlu0 %v595
          %v597 = vpop.xlane.xlu0 %596
          %v598 = vrcp.pop 48.0
          %v599 = vmul.f32 %v594, %v598
          %v600 = vmul.f32 %v597, %v598
          %v601 = vsub.f32 %v556, %v599
          %v602 = vsub.f32 %v557, %v600
          %v603 = vmul.f32 %v601, %v601
          %v604 = vmul.f32 %v602, %v602
          %v605 = vsel %vm591, %v603, 0.0
          %606 = vadd.xlane.f32.xlu0 %v605
          %v607 = vpop.xlane.xlu0 %606
          %v608 = vsel %vm591, %v604, 0.0
          %609 = vadd.xlane.f32.xlu0 %v608
          %v610 = vpop.xlane.xlu0 %609
          %v611 = vmul.f32 %v607, %v598
          %v612 = vmul.f32 %v610, %v598
          %v613 = vadd.f32 %v611, 1e-05
          %v614 = vadd.f32 %v612, 1e-05
          %v615 = vrsqrt.pop %v613
          %v616 = vrsqrt.pop %v614
          %v617 = vmul.f32 %v601, %v615
          %v618 = vmul.f32 %v602, %v616
          %v620 = vlaneseq
          %v621 = vshrl.u32 %v620, 7
          %v622 = vsub.s32 0, %v621
          %v623 = vrot.slane %v589, %v622
          %v625 = vmul.f32 %v617, %v623
          %v626 = vmul.f32 %v618, %v623
          %v628 = vlaneseq
          %v629 = vshrl.u32 %v628, 7
          %v630 = vsub.s32 0, %v629
          %v631 = vrot.slane %v590, %v630
          %v633 = vadd.f32 %v625, %v631
          %v634 = vadd.f32 %v626, %v631
          %v635 = vpack.c.bf16 %v588, %v588
          %v636 = vld [vmem:[#allocation11] sm:$0xf]
          %v637 = vld [vmem:[#allocation11 + $0x4] sm:$0xf]
          %v638 = vld [vmem:[#allocation11 + $0x8] sm:$0xf]
          %v639 = vld [vmem:[#allocation11 + $0xc] sm:$0xf]
          %v640 = vld [vmem:[%s7] sm:$0x1]
          %v642 = vlaneseq
          %v643 = vshrl.u32 %v642, 7
          %v644 = vsub.s32 0, %v643
          %v645 = vrot.slane %v640, %v644
          %v651 = vunpack.c.l.b16 %v636
          %v652 = vunpack.c.l.b16 %v637
          %v653 = vunpack.c.l.b16 %v638
          %v654 = vunpack.c.l.b16 %v639
          %v655 = vpack.c.b16 %v652, %v651
          %v656 = vpack.c.b16 %v654, %v653
          %v660 = vsel %vm560, %v635, 0
          %662 = vmatprep.subr.bf16.mxu0 0
          %663 = vmatpush1.bf16.msra.mxu0 %v655
          %664 = vmatprep.subr.bf16.mxu0 0
          %665 = vmatpush1.bf16.msra.mxu0 %v656
          %666 = vmatprep.subr.bf16.mxu0 0
          %667 = vmatpush1.bf16.msra.mxu0 0
          %668 = vmatprep.subr.bf16.mxu0 0
          %669 = vmatpush1.bf16.msra.mxu0 0
          %670 = vmatprep.subr.bf16.mxu0 0
          %671 = vmatpush1.bf16.msra.mxu0 0
          %672 = vmatprep.subr.bf16.mxu0 0
          %673 = vmatpush1.bf16.msra.mxu0 0
          %674 = vmatprep.subr.bf16.mxu0 0
          %675 = vmatpush1.bf16.msra.mxu0 0
          %676 = vmatprep.subr.bf16.mxu0 0
          %677 = vmatpush1.bf16.msra.mxu0 0
          %678 = vmatprep.subr.bf16.mxu0 0
          %679 = vmatpush1.bf16.msra.mxu0 0
          %680 = vmatprep.subr.bf16.mxu0 0
          %681 = vmatpush1.bf16.msra.mxu0 0
          %682 = vmatprep.subr.bf16.mxu0 0
          %683 = vmatpush1.bf16.msra.mxu0 0
          %684 = vmatprep.subr.bf16.mxu0 0
          %685 = vmatpush1.bf16.msra.mxu0 0
          %686 = vmatprep.subr.bf16.mxu0 0
          %687 = vmatpush1.bf16.msra.mxu0 0
          %688 = vmatprep.subr.bf16.mxu0 0
          %689 = vmatpush1.bf16.msra.mxu0 0
          %690 = vmatprep.subr.bf16.mxu0 0
          %691 = vmatpush1.bf16.msra.mxu0 0
          %692 = vmatprep.subr.bf16.mxu0 0
          %693 = vmatpush1.bf16.msra.mxu0 0
          %694 = vmatprep.mubr.bf16.mxu0 0
          %695 = vmatmul.mubr.bf16.gmra.mrb[0].mxu0 %v660
          %v696 = vpop.f32.mrb[0].mxu0
          %v697 = vadd.f32 %v645, %v696
          %v698 = vpop.f32.mrb[0].mxu0
          %v699 = vpop.f32.mrb[0].mxu0
          %v700 = vpop.f32.mrb[0].mxu0
          %701 = vdwg.mxu0
          %v702 = vmul.f32 %v697, 0.35355338
          %v703 = vpack.c.bf16 %v634, %v633
          %v704 = vld [vmem:[%s8] sm:$0xf]
          %v705 = vld [vmem:[%s8 + $0x4] sm:$0xf]
          %v706 = vld [vmem:[%s8 + $0x8] sm:$0xf]
          %v707 = vld [vmem:[%s8 + $0xc] sm:$0xf]
          %v708 = vld [vmem:[%s8 + $0x10] sm:$0xf]
          %v709 = vld [vmem:[%s8 + $0x14] sm:$0xf]
          %v710 = vld [vmem:[%s9] sm:$0x1]
          %v712 = vlaneseq
          %v713 = vshrl.u32 %v712, 7
          %v714 = vsub.s32 0, %v713
          %v715 = vrot.slane %v710, %v714
          %v723 = vunpack.c.l.b16 %v704
          %v724 = vunpack.c.l.b16 %v705
          %v725 = vunpack.c.l.b16 %v706
          %v726 = vunpack.c.l.b16 %v707
          %v727 = vunpack.c.l.b16 %v708
          %v728 = vunpack.c.l.b16 %v709
          %v729 = vpack.c.b16 %v724, %v723
          %v730 = vpack.c.b16 %v726, %v725
          %v731 = vpack.c.b16 %v728, %v727
          %v736 = vsel %vm591, %v703, 0
          %738 = vmatprep.subr.bf16.mxu0 0
          %739 = vmatpush1.bf16.msra.mxu0 %v729
          %740 = vmatprep.subr.bf16.mxu0 0
          %741 = vmatpush1.bf16.msra.mxu0 %v730
          %742 = vmatprep.subr.bf16.mxu0 0
          %743 = vmatpush1.bf16.msra.mxu0 %v731
          %744 = vmatprep.subr.bf16.mxu0 0
          %745 = vmatpush1.bf16.msra.mxu0 0
          %746 = vmatprep.subr.bf16.mxu0 0
          %747 = vmatpush1.bf16.msra.mxu0 0
          %748 = vmatprep.subr.bf16.mxu0 0
          %749 = vmatpush1.bf16.msra.mxu0 0
          %750 = vmatprep.subr.bf16.mxu0 0
          %751 = vmatpush1.bf16.msra.mxu0 0
          %752 = vmatprep.subr.bf16.mxu0 0
          %753 = vmatpush1.bf16.msra.mxu0 0
          %754 = vmatprep.subr.bf16.mxu0 0
          %755 = vmatpush1.bf16.msra.mxu0 0
          %756 = vmatprep.subr.bf16.mxu0 0
          %757 = vmatpush1.bf16.msra.mxu0 0
          %758 = vmatprep.subr.bf16.mxu0 0
          %759 = vmatpush1.bf16.msra.mxu0 0
          %760 = vmatprep.subr.bf16.mxu0 0
          %761 = vmatpush1.bf16.msra.mxu0 0
          %762 = vmatprep.subr.bf16.mxu0 0
          %763 = vmatpush1.bf16.msra.mxu0 0
          %764 = vmatprep.subr.bf16.mxu0 0
          %765 = vmatpush1.bf16.msra.mxu0 0
          %766 = vmatprep.subr.bf16.mxu0 0
          %767 = vmatpush1.bf16.msra.mxu0 0
          %768 = vmatprep.subr.bf16.mxu0 0
          %769 = vmatpush1.bf16.msra.mxu0 0
          %770 = vmatprep.mubr.bf16.mxu0 0
          %771 = vmatmul.mubr.bf16.gmra.mrb[0].mxu0 %v736
          %v772 = vpop.f32.mrb[0].mxu0
          %v773 = vadd.f32 %v715, %v772
          %v774 = vpop.f32.mrb[0].mxu0
          %v775 = vpop.f32.mrb[0].mxu0
          %v776 = vadd.f32 %v715, %v775
          %v777 = vpop.f32.mrb[0].mxu0
          %778 = vdwg.mxu0
          %v779 = vpack.c.bf16 %v702, %v702
          %v780 = vpack.c.bf16 %v776, %v773
          %vm781 = vcmask 60416
          %782 = vst.msk [vmem:[#allocation2] sm:$0xf] %vm781, %v779
          %vm783 = vcmask 64512
          %784 = vst.msk [vmem:[#allocation3] sm:$0xff] %vm783, %v780
          %786 = vrot.lane.b32.xlu0 %v780, 96
          %v787 = vpop.permute.xlu0 %786
          %789 = vst.msk [vmem:[#allocation4] sm:$0xff] %vm783, %v787
          %v791 = vunpack.c.l.b16 %v779
          %v792 = vpack.c.b16 %v791, %v791
          %793 = vrot.lane.b32.xlu0 %v792, 120
          %v794 = vpop.permute.xlu0 %793
          %s796 = scalar_lea.vmem [#allocation2], 4
          %797 = vst.msk [vmem:[%s796] sm:$0xf] %vm781, %v794
          %798 = vrot.lane.b32.xlu0 %v780, 120
          %v799 = vpop.permute.xlu0 %798
          %s801 = scalar_lea.vmem [#allocation3], 8
          %802 = vst.msk [vmem:[%s801] sm:$0xff] %vm783, %v799
          %803 = vrot.lane.b32.xlu0 %v780, 88
          %v804 = vpop.permute.xlu0 %803
          %s806 = scalar_lea.vmem [#allocation4], 8
          %807 = vst.msk [vmem:[%s806] sm:$0xff] %vm783, %v804
          %808 = vrot.lane.b32.xlu0 %v792, 112
          %v809 = vpop.permute.xlu0 %808
          %s811 = scalar_lea.vmem [#allocation2], 8
          %812 = vst.msk [vmem:[%s811] sm:$0xf] %vm781, %v809
          %813 = vrot.lane.b32.xlu0 %v780, 112
          %v814 = vpop.permute.xlu0 %813
          %s816 = scalar_lea.vmem [#allocation3], 16
          %817 = vst.msk [vmem:[%s816] sm:$0xff] %vm783, %v814
          %818 = vrot.lane.b32.xlu0 %v780, 80
          %v819 = vpop.permute.xlu0 %818
          %s821 = scalar_lea.vmem [#allocation4], 16
          %822 = vst.msk [vmem:[%s821] sm:$0xff] %vm783, %v819
          %823 = vrot.lane.b32.xlu0 %v792, 104
          %v824 = vpop.permute.xlu0 %823
          %s826 = scalar_lea.vmem [#allocation2], 12
          %827 = vst.msk [vmem:[%s826] sm:$0xf] %vm781, %v824
          %828 = vrot.lane.b32.xlu0 %v780, 104
          %v829 = vpop.permute.xlu0 %828
          %s831 = scalar_lea.vmem [#allocation3], 24
          %832 = vst.msk [vmem:[%s831] sm:$0xff] %vm783, %v829
          %833 = vrot.lane.b32.xlu0 %v780, 72
          %v834 = vpop.permute.xlu0 %833
          %s836 = scalar_lea.vmem [#allocation4], 24
          %837 = vst.msk [vmem:[%s836] sm:$0xff] %vm783, %v834
          %v838 = vld [vmem:[%s11] sm:$0x1]
          %v840 = vlaneseq
          %v841 = vshrl.u32 %v840, 7
          %v842 = vsub.s32 0, %v841
          %v843 = vrot.slane %v838, %v842
          %845 = vst.msk [vmem:[#allocation5] sm:$0xff] %vm560, %v843
        $region88: #{tpu_custom_call.1} parent=67 // pred_fallthru
          _
        %s846 = smul.addr %s43, 4
        %s847 = scalar_lea.vmem [#allocation2], %s846
        %v848 = vld [vmem:[%s847] sm:$0xf]
        %s849 = smul.addr %s43, 8
        %s850 = scalar_lea.vmem [#allocation3], %s849
        %v851 = vld [vmem:[%s850] sm:$0xff]
        %s852 = smul.addr %s43, 8
        %s853 = scalar_lea.vmem [#allocation4], %s852
        %v854 = vld [vmem:[%s853] sm:$0xff]
        %vm855 = vcmask 64512
        %v857 = vsel %vm855, %v848, 0
        %v860 = vsel %vm855, %v851, 0
        %862 = vmatprep.subr.bf16.mxu0 0
        %863 = vmatpush1.bf16.xpose.msra.mxu0 %v860
        %864 = vmatprep.subr.bf16.mxu0 0
        %865 = vmatpush1.bf16.xpose.msra.mxu0 0
        %866 = vmatprep.subr.bf16.mxu0 0
        %867 = vmatpush1.bf16.xpose.msra.mxu0 0
        %868 = vmatprep.subr.bf16.mxu0 0
        %869 = vmatpush1.bf16.xpose.msra.mxu0 0
        %870 = vmatprep.subr.bf16.mxu0 0
        %871 = vmatpush1.bf16.xpose.msra.mxu0 0
        %872 = vmatprep.subr.bf16.mxu0 0
        %873 = vmatpush1.bf16.xpose.msra.mxu0 0
        %874 = vmatprep.subr.bf16.mxu0 0
        %875 = vmatpush1.bf16.xpose.msra.mxu0 0
        %876 = vmatprep.subr.bf16.mxu0 0
        %877 = vmatpush1.bf16.xpose.msra.mxu0 0
        %878 = vmatprep.subr.bf16.mxu0 0
        %879 = vmatpush1.bf16.xpose.msra.mxu0 0
        %880 = vmatprep.subr.bf16.mxu0 0
        %881 = vmatpush1.bf16.xpose.msra.mxu0 0
        %882 = vmatprep.subr.bf16.mxu0 0
        %883 = vmatpush1.bf16.xpose.msra.mxu0 0
        %884 = vmatprep.subr.bf16.mxu0 0
        %885 = vmatpush1.bf16.xpose.msra.mxu0 0
        %886 = vmatprep.subr.bf16.mxu0 0
        %887 = vmatpush1.bf16.xpose.msra.mxu0 0
        %888 = vmatprep.subr.bf16.mxu0 0
        %889 = vmatpush1.bf16.xpose.msra.mxu0 0
        %890 = vmatprep.subr.bf16.mxu0 0
        %891 = vmatpush1.bf16.xpose.msra.mxu0 0
        %892 = vmatprep.subr.bf16.mxu0 0
        %893 = vmatpush1.bf16.xpose.msra.mxu0 0
        %894 = vmatprep.mubr.bf16.mxu0 0
        %895 = vmatmul.mubr.bf16.gmra.mrb[0].mxu0 %v857
        %v896 = vpop.f32.mrb[0].mxu0
        %v897 = vadd.f32 0.0, %v896
        %v898 = vpop.f32.mrb[0].mxu0
        %v899 = vpop.f32.mrb[0].mxu0
        %v900 = vpop.f32.mrb[0].mxu0
        %901 = vdwg.mxu0
        %vm902 = vcmask 130048
        %v903 = vsel %vm902, %v897, -inf
        %904 = vmax.xlane.f32.xlu0 %v903
        %v905 = vpop.xlane.xlu0 %904
        %v906 = vsub.f32 %v897, %v905
        %v907 = vmul.f32 %v906, 1.442695
        %v908 = vpow.pop %v907
        %v909 = vsel %vm902, %v908, 0.0
        %910 = vadd.xlane.f32.xlu0 %v909
        %v911 = vpop.xlane.xlu0 %910
        %v912 = vrcp.pop %v911
        %v913 = vmul.f32 %v908, %v912
        %914 = vst.msk [vmem:[%s549] sm:$0xff] %vm902, %v913
        %v915 = vpack.c.bf16 %v913, %v913
        %v917 = vsel %vm902, %v915, 0
        %919 = vmatprep.subr.bf16.mxu0 0
        %920 = vmatpush1.bf16.msra.mxu0 %v854
        %921 = vmatprep.subr.bf16.mxu0 0
        %922 = vmatpush1.bf16.msra.mxu0 0
        %923 = vmatprep.subr.bf16.mxu0 0
        %924 = vmatpush1.bf16.msra.mxu0 0
        %925 = vmatprep.subr.bf16.mxu0 0
        %926 = vmatpush1.bf16.msra.mxu0 0
        %927 = vmatprep.subr.bf16.mxu0 0
        %928 = vmatpush1.bf16.msra.mxu0 0
        %929 = vmatprep.subr.bf16.mxu0 0
        %930 = vmatpush1.bf16.msra.mxu0 0
        %931 = vmatprep.subr.bf16.mxu0 0
        %932 = vmatpush1.bf16.msra.mxu0 0
        %933 = vmatprep.subr.bf16.mxu0 0
        %934 = vmatpush1.bf16.msra.mxu0 0
        %935 = vmatprep.subr.bf16.mxu0 0
        %936 = vmatpush1.bf16.msra.mxu0 0
        %937 = vmatprep.subr.bf16.mxu0 0
        %938 = vmatpush1.bf16.msra.mxu0 0
        %939 = vmatprep.subr.bf16.mxu0 0
        %940 = vmatpush1.bf16.msra.mxu0 0
        %941 = vmatprep.subr.bf16.mxu0 0
        %942 = vmatpush1.bf16.msra.mxu0 0
        %943 = vmatprep.subr.bf16.mxu0 0
        %944 = vmatpush1.bf16.msra.mxu0 0
        %945 = vmatprep.subr.bf16.mxu0 0
        %946 = vmatpush1.bf16.msra.mxu0 0
        %947 = vmatprep.subr.bf16.mxu0 0
        %948 = vmatpush1.bf16.msra.mxu0 0
        %949 = vmatprep.subr.bf16.mxu0 0
        %950 = vmatpush1.bf16.msra.mxu0 0
        %951 = vmatprep.mubr.bf16.mxu0 0
        %952 = vmatmul.mubr.bf16.gmra.mrb[0].mxu0 %v917
        %v953 = vpop.f32.mrb[0].mxu0
        %v954 = vadd.f32 0.0, %v953
        %v955 = vpop.f32.mrb[0].mxu0
        %v956 = vpop.f32.mrb[0].mxu0
        %v957 = vpop.f32.mrb[0].mxu0
        %958 = vdwg.mxu0
        %v959 = vld [vmem:[#allocation5] sm:$0xff]
        %v960 = vpack.c.bf16 %v954, %v954
        %s961 = smul.addr %s43, 4
        %s962 = scalar_lea.vmem [#allocation12], %s961
        %v963 = vld [vmem:[%s962] sm:$0xf]
        %v965 = vsel %vm855, %v960, 0
        %vm967 = vcmask 1043456
        %v969 = vsel %vm967, %v963, 0
        %971 = vmatprep.subr.bf16.mxu0 0
        %972 = vmatpush1.bf16.msra.mxu0 %v969
        %973 = vmatprep.subr.bf16.mxu0 0
        %974 = vmatpush1.bf16.msra.mxu0 0
        %975 = vmatprep.subr.bf16.mxu0 0
        %976 = vmatpush1.bf16.msra.mxu0 0
        %977 = vmatprep.subr.bf16.mxu0 0
        %978 = vmatpush1.bf16.msra.mxu0 0
        %979 = vmatprep.subr.bf16.mxu0 0
        %980 = vmatpush1.bf16.msra.mxu0 0
        %981 = vmatprep.subr.bf16.mxu0 0
        %982 = vmatpush1.bf16.msra.mxu0 0
        %983 = vmatprep.subr.bf16.mxu0 0
        %984 = vmatpush1.bf16.msra.mxu0 0
        %985 = vmatprep.subr.bf16.mxu0 0
        %986 = vmatpush1.bf16.msra.mxu0 0
        %987 = vmatprep.subr.bf16.mxu0 0
        %988 = vmatpush1.bf16.msra.mxu0 0
        %989 = vmatprep.subr.bf16.mxu0 0
        %990 = vmatpush1.bf16.msra.mxu0 0
        %991 = vmatprep.subr.bf16.mxu0 0
        %992 = vmatpush1.bf16.msra.mxu0 0
        %993 = vmatprep.subr.bf16.mxu0 0
        %994 = vmatpush1.bf16.msra.mxu0 0
        %995 = vmatprep.subr.bf16.mxu0 0
        %996 = vmatpush1.bf16.msra.mxu0 0
        %997 = vmatprep.subr.bf16.mxu0 0
        %998 = vmatpush1.bf16.msra.mxu0 0
        %999 = vmatprep.subr.bf16.mxu0 0
        %1000 = vmatpush1.bf16.msra.mxu0 0
        %1001 = vmatprep.subr.bf16.mxu0 0
        %1002 = vmatpush1.bf16.msra.mxu0 0
        %1003 = vmatprep.mubr.bf16.mxu0 0
        %1004 = vmatmul.mubr.bf16.gmra.mrb[0].mxu0 %v965
        %v1005 = vpop.f32.mrb[0].mxu0
        %v1006 = vadd.f32 0.0, %v1005
        %v1007 = vpop.f32.mrb[0].mxu0
        %v1008 = vpop.f32.mrb[0].mxu0
        %v1009 = vpop.f32.mrb[0].mxu0
        %1010 = vdwg.mxu0
        %v1011 = vadd.f32 %v959, %v1006
        %vm1012 = vcmask 261120
        %1013 = vst.msk [vmem:[#allocation5] sm:$0xff] %vm1012, %v1011
        %p1014 = scmp.eq.s32.totalorder %s43, 3
        // Predicated region
        $region89: #{tpu_custom_call.1} parent=67 // pred_check
          %p1015 = pneg %p1014
        $region90: #{tpu_custom_call.1} parent=67 // pred_check_branch
          %1017 = sbr.rel (%p1015) target = $region92
        $region91: #{tpu_custom_call.1} parent=67 // pred_region
          %v1018 = vld [vmem:[#allocation5] sm:$0xff]
          %1019 = vst.msk [vmem:[%s542] sm:$0xff] %vm1012, %v1018
        $region92: #{tpu_custom_call.1} parent=67 // pred_fallthru
          _
        %s1020 = sand.u32 %s320, 1
        %s1021 = scalar_lea.sflag [#allocation8], %s1020
        %s1022 = sand.u32 %s320, 1
        %s1023 = smul.addr %s1022, 8
        %s1024 = scalar_lea.vmem [#allocation14], %s1023
        %s1025 = sand.u32 %s348, 1
        %s1026 = scalar_lea.sflag [#allocation16], %s1025
        %s1027 = sand.u32 %s348, 1
        %s1028 = smul.addr %s1027, 8
        %s1029 = scalar_lea.vmem [#allocation15], %s1028
        // Predicated region
        $region93: #{tpu_custom_call.1} parent=67 // pred_check
          %p1030 = pneg %p330
        $region94: #{tpu_custom_call.1} parent=67 // pred_check_branch
          %1032 = sbr.rel (%p1030) target = $region96
        $region95: #{tpu_custom_call.1} parent=67 // pred_region
          %s1034 = ssub.s32 128, 128
          %1035 = vsyncadd %s1021, %s1034
          %s1036 = smul.addr %s42, 128
          %s1037 = scalar_lea.hbm %s12, %s1036
          %s1039 = sshll.u32 %s1024, 4
          %s1040 = int_to_ptr.vmem [resolvable:$true] %s1039
          %1042 = dma.vmem_to_hbm [thread:$0]  %s1040, 128, %s1037, %s1021
        $region96: #{tpu_custom_call.1} parent=67 // pred_fallthru
          _
        // Predicated region
        $region97: #{tpu_custom_call.1} parent=67 // pred_check
          %p1043 = pneg %p358
        $region98: #{tpu_custom_call.1} parent=67 // pred_check_branch
          %1045 = sbr.rel (%p1043) target = $region100
        $region99: #{tpu_custom_call.1} parent=67 // pred_region
          %s1047 = ssub.s32 128, 128
          %1048 = vsyncadd %s1026, %s1047
          %s1049 = smul.addr %s42, 4
          %s1050 = sadd.s32 %s43, %s1049
          %s1051 = smul.addr %s1050, 128
          %s1052 = scalar_lea.hbm %s13, %s1051
          %s1054 = sshll.u32 %s1029, 4
          %s1055 = int_to_ptr.vmem [resolvable:$true] %s1054
          %1057 = dma.vmem_to_hbm [thread:$0]  %s1055, 128, %s1052, %s1026
        $region100: #{tpu_custom_call.1} parent=67 // pred_fallthru
          _
      $region68: #{tpu_custom_call.1} parent=5 // pred_fallthru
        _
      %p1058 = scmp.le.s32.totalorder 2, %s33
      // Predicated region
      $region101: #{tpu_custom_call.1} parent=5 // pred_check
        %p1059 = pneg %p1058
      $region102: #{tpu_custom_call.1} parent=5 // pred_check_branch
        %1061 = sbr.rel (%p1059) target = $region104
      $region103: #{tpu_custom_call.1} parent=5 // pred_region
        %s1062 = ssub.s32 %s33, 2
        // Predicated region
        $region105: #{tpu_custom_call.1} parent=103 // pred_check
          %p1063 = pneg %p336
        $region106: #{tpu_custom_call.1} parent=103 // pred_check_branch
          %1065 = sbr.rel (%p1063) target = $region108
        $region107: #{tpu_custom_call.1} parent=103 // pred_region
          %s1066 = sand.u32 %s321, 1
          %s1067 = scalar_lea.sflag [#allocation8], %s1066
          %s1068 = sand.u32 %s321, 1
          %s1069 = smul.addr %s1068, 8
          %s1070 = scalar_lea.vmem [#allocation14], %s1069
          %1071 = dma.done %s1067, 128
        $region108: #{tpu_custom_call.1} parent=103 // pred_fallthru
          _
        // Predicated region
        $region109: #{tpu_custom_call.1} parent=103 // pred_check
          %p1072 = pneg %p364
        $region110: #{tpu_custom_call.1} parent=103 // pred_check_branch
          %1074 = sbr.rel (%p1072) target = $region112
        $region111: #{tpu_custom_call.1} parent=103 // pred_region
          %s1075 = sand.u32 %s349, 1
          %s1076 = scalar_lea.sflag [#allocation16], %s1075
          %s1077 = sand.u32 %s349, 1
          %s1078 = smul.addr %s1077, 8
          %s1079 = scalar_lea.vmem [#allocation15], %s1078
          %1080 = dma.done %s1076, 128
        $region112: #{tpu_custom_call.1} parent=103 // pred_fallthru
          _
      $region104: #{tpu_custom_call.1} parent=5 // pred_fallthru
        _
    $region6: #{tpu_custom_call.1} parent=1 // loop_footer
      %s37 = sadd.s32 1, %s33
    $region7: #{tpu_custom_call.1} parent=1 // loop_footer_branch
      %32 = sbr.rel target = $region3
    $region8: #{tpu_custom_call.1} parent=1 // loop_exit
      _
    %1081 = vsyncpa [#allocation7], 1
    %s1082 = scalar_lea.sflag [#allocation7], 1
    %1083 = vsyncpa %s1082, 1
    %1084 = vsyncpa [#allocation10], 1
    %s1085 = scalar_lea.sflag [#allocation10], 1
    %1086 = vsyncpa %s1085, 1
    %1087 = vsyncpa [#allocation13], 1
    %1088 = vsyncpa [#allocation8], 1
    %s1089 = scalar_lea.sflag [#allocation8], 1
    %1090 = vsyncpa %s1089, 1
    %1091 = vsyncpa [#allocation16], 1
    %s1092 = scalar_lea.sflag [#allocation16], 1
    %1093 = vsyncpa %s1092, 1

</llo_original>
